<compile_context>
chip_gen: v7x
topology: tpu7x:2x2x1
jax: 0.10.0
libtpu: 0.0.40
codegen_flags: <defaults>
</compile_context>

<pallas_src>
import functools

import jax
import jax.numpy as jnp
from jax.experimental import pallas as pl
from jax.experimental.pallas import tpu as pltpu


def _round_up(x, m):
    return (x + m - 1) // m * m


def _flow_integrate_kernel(gyx_ref, ex_ref, eyt_ref, flow_ref, out_ref, *,
                           H, W, HWp, nsteps, scale):
    """One batch element per grid step.

    gyx_ref  : [2, HWp]   row 0 = gy = p // W, row 1 = gx = p % W  (padded lanes = -1e6)
    ex_ref   : [W, HWp]   E_x[x, p]  = (p % W  == x)   (0 in padded lanes)
    eyt_ref  : [HWp, H]   E_yT[p, y] = (p // W == y)   (0 in padded lanes)
    flow_ref / out_ref : [1, 2, HWp]
    """
    f32 = jnp.float32

    # Loop-invariant constants: load / build once, before the squaring loop.
    gy = gyx_ref[0:1, :]                                            # [1, HWp]
    gx = gyx_ref[1:2, :]                                            # [1, HWp]
    e_x = ex_ref[...]                                               # [W, HWp]
    e_yt = eyt_ref[...]                                             # [HWp, H]
    iota_h = jax.lax.broadcasted_iota(jnp.int32, (H, HWp), 0)       # source row idx
    iota_w = jax.lax.broadcasted_iota(jnp.int32, (W, HWp), 0)       # source col idx

    flow0 = flow_ref[0].astype(f32) * f32(scale)                    # [2, HWp]

    def squaring_step(_, flow):
        # Sampling positions = identity grid + current displacement.
        sy = gy + flow[0:1, :]                                      # [1, HWp]
        sx = gx + flow[1:2, :]                                      # [1, HWp]

        y0f = jnp.floor(sy)
        x0f = jnp.floor(sx)
        wy1 = sy - y0f
        wy0 = 1.0 - wy1
        wx1 = sx - x0f
        wx0 = 1.0 - wx1
        y0 = y0f.astype(jnp.int32)
        x0 = x0f.astype(jnp.int32)

        # Separable weighted one-hots.  Out-of-range corner indices never match
        # the iota (which only spans valid rows/cols), so grid_sample's
        # padding_mode='zeros' falls out for free.  Padded lanes (gy = gx = -1e6)
        # never match either, so they stay exactly zero.
        ry = (jnp.where(iota_h == y0, wy0, 0.0) +
              jnp.where(iota_h == y0 + 1, wy1, 0.0))                # [H, HWp]
        cx = (jnp.where(iota_w == x0, wx0, 0.0) +
              jnp.where(iota_w == x0 + 1, wx1, 0.0))                # [W, HWp]

        # Un-flatten the flat flow to a (transposed) 2-D image via constant
        # one-hot matmuls:  f2dT[c*W + x, y] = flow2d[c, y, x].
        f_sel = jnp.concatenate(
            [flow[0:1, :] * e_x, flow[1:2, :] * e_x], axis=0)       # [2W, HWp]
        f2dT = jnp.dot(f_sel, e_yt,
                       preferred_element_type=f32,
                       precision=jax.lax.Precision.HIGHEST)         # [2W, H]

        # Row gather (matmul), then column gather (multiply + sublane reduce).
        v = jnp.dot(f2dT, ry,
                    preferred_element_type=f32,
                    precision=jax.lax.Precision.HIGHEST)            # [2W, HWp]
        warped_y = jnp.sum(v[0:W, :] * cx, axis=0, keepdims=True)   # [1, HWp]
        warped_x = jnp.sum(v[W:2 * W, :] * cx, axis=0, keepdims=True)
        warped = jnp.concatenate([warped_y, warped_x], axis=0)      # [2, HWp]

        return flow + warped

    flow_final = jax.lax.fori_loop(0, nsteps, squaring_step, flow0)
    out_ref[0] = flow_final.astype(out_ref.dtype)


def flow_integration(flow_nchw, nsteps, downsize=1):
    """Pallas implementation of FlowIntegration.forward (2-D flow, downsize=1)."""
    assert nsteps >= 0
    assert downsize == 1, "downsize > 1 (ResizeTransform) not implemented"
    N, C, H, W = flow_nchw.shape
    assert C == 2, "2-D displacement field expected (C == 2)"
    # torch's [-1,1] normalization divides by (size-1); degenerate dims differ.
    assert H > 1 and W > 1, "H and W must both be > 1"

    HW = H * W
    HWp = _round_up(HW, 128)          # lane-dense padding
    scale = 1.0 / (2 ** nsteps)

    flow_flat = flow_nchw.reshape(N, C, HW)
    if HWp != HW:
        flow_flat = jnp.pad(flow_flat, ((0, 0), (0, 0), (0, HWp - HW)))

    # Host-side constants (index helpers + un-flatten one-hots); padded lanes are
    # pushed far out of range so they never contribute.
    p = jnp.arange(HWp)
    in_range = p < HW
    gy = jnp.where(in_range, p // W, -(10 ** 6)).astype(jnp.float32)
    gx = jnp.where(in_range, p % W, -(10 ** 6)).astype(jnp.float32)
    gyx = jnp.stack([gy, gx], axis=0)                                        # [2, HWp]
    e_x = (gx[None, :] ==
           jnp.arange(W, dtype=jnp.float32)[:, None]).astype(jnp.float32)    # [W, HWp]
    e_yt = (gy[:, None] ==
            jnp.arange(H, dtype=jnp.float32)[None, :]).astype(jnp.float32)   # [HWp, H]

    kernel = functools.partial(
        _flow_integrate_kernel, H=H, W=W, HWp=HWp, nsteps=nsteps, scale=scale
    )

    out_flat = pl.pallas_call(
        kernel,
        out_shape=jax.ShapeDtypeStruct((N, C, HWp), flow_nchw.dtype),
        grid_spec=pltpu.PrefetchScalarGridSpec(
            num_scalar_prefetch=0,
            grid=(N,),
            in_specs=[
                pl.BlockSpec((2, HWp), lambda b: (0, 0)),        # gyx   (constant)
                pl.BlockSpec((W, HWp), lambda b: (0, 0)),        # E_x   (constant)
                pl.BlockSpec((HWp, H), lambda b: (0, 0)),        # E_yT  (constant)
                pl.BlockSpec((1, C, HWp), lambda b: (b, 0, 0)),  # flow
            ],
            out_specs=pl.BlockSpec((1, C, HWp), lambda b: (b, 0, 0)),
        ),
        compiler_params=pltpu.CompilerParams(
            dimension_semantics=("parallel",),   # batch axis can shard across cores
        ),
    )(gyx, e_x, e_yt, flow_flat)

    return out_flat[:, :, :HW].reshape(N, C, H, W)


# ---------------------------------------------------------------------------
# Pure-JAX reference (bilinear grid_sample with zeros padding, align_corners=True)
# ---------------------------------------------------------------------------
def _reference_flow_integration(flow_nchw, nsteps):
    N, C, H, W = flow_nchw.shape
    flow = flow_nchw.astype(jnp.float32) * (1.0 / (2 ** nsteps))
    gy = jnp.broadcast_to(jnp.arange(H, dtype=jnp.float32)[:, None], (H, W))
    gx = jnp.broadcast_to(jnp.arange(W, dtype=jnp.float32)[None, :], (H, W))

    def gather(img, yi, xi):
        valid = (yi >= 0) & (yi < H) & (xi >= 0) & (xi < W)
        yc = jnp.clip(yi, 0, H - 1)
        xc = jnp.clip(xi, 0, W - 1)
        idx = (yc * W + xc).reshape(N, 1, H * W)
        vals = jnp.take_along_axis(
            img.reshape(N, C, H * W), jnp.broadcast_to(idx, (N, C, H * W)), axis=2
        ).reshape(N, C, H, W)
        return vals * valid[:, None, :, :].astype(img.dtype)

    for _ in range(nsteps):
        sy = gy[None] + flow[:, 0]
        sx = gx[None] + flow[:, 1]
        y0 = jnp.floor(sy).astype(jnp.int32)
        x0 = jnp.floor(sx).astype(jnp.int32)
        wy1 = sy - y0
        wy0 = 1.0 - wy1
        wx1 = sx - x0
        wx0 = 1.0 - wx1
        warped = ((wy0 * wx0)[:, None] * gather(flow, y0, x0)
                  + (wy0 * wx1)[:, None] * gather(flow, y0, x0 + 1)
                  + (wy1 * wx0)[:, None] * gather(flow, y0 + 1, x0)
                  + (wy1 * wx1)[:, None] * gather(flow, y0 + 1, x0 + 1))
        flow = flow + warped
    return flow


if __name__ == "__main__":
    key = jax.random.PRNGKey(0)
    N, C, H, W = 2, 2, 16, 16
    nsteps = 4

    # Small displacement field (pixel units), float32.
    flow = 2.0 * jax.random.normal(key, (N, C, H, W), dtype=jnp.float32)

    out = flow_integration(flow, nsteps=nsteps, downsize=1)
    out = jax.block_until_ready(out)

    assert out.shape == (N, C, H, W)
    assert bool(jnp.all(jnp.isfinite(out)))

    ref = _reference_flow_integration(flow, nsteps)
    err = float(jnp.max(jnp.abs(out.astype(jnp.float32) - ref)))
    assert err < 1e-2, f"mismatch vs reference: max abs err = {err}"

    print("KERNEL_OK")
</pallas_src>

<mosaic_0001>
module attributes {stable_mosaic.version = 11 : i64} {
  func.func @_flow_integrate_kernel(%arg0: i32, %arg1: memref<2x256xf32, #tpu.memory_space<vmem>>, %arg2: memref<16x256xf32, #tpu.memory_space<vmem>>, %arg3: memref<256x16xf32, #tpu.memory_space<vmem>>, %arg4: memref<1x2x256xf32, #tpu.memory_space<vmem>>, %arg5: memref<1x2x256xf32, #tpu.memory_space<vmem>>) attributes {dimension_semantics = [#tpu.dimension_semantics<parallel>], iteration_bounds = array<i64: 2>, scalar_prefetch = 0 : i64, scratch_operands = 0 : i64, tpu.core_type = #tpu.core_type<tc>, window_params = [{pipeline_mode = #tpu.pipeline_mode<synchronous>, transform_indices = @transform_0, window_bounds = array<i64: 2, 256>}, {pipeline_mode = #tpu.pipeline_mode<synchronous>, transform_indices = @transform_1, window_bounds = array<i64: 16, 256>}, {pipeline_mode = #tpu.pipeline_mode<synchronous>, transform_indices = @transform_2, window_bounds = array<i64: 256, 16>}, {transform_indices = @transform_3, window_bounds = array<i64: 1, 2, 256>}, {transform_indices = @transform_4, window_bounds = array<i64: 1, 2, 256>}]} {
    %c0 = arith.constant 0 : index
    %c0_0 = arith.constant 0 : index
    %0 = vector.load %arg1[%c0, %c0_0] : memref<2x256xf32, #tpu.memory_space<vmem>>, vector<1x256xf32>
    %c1 = arith.constant 1 : index
    %c0_1 = arith.constant 0 : index
    %1 = vector.load %arg1[%c1, %c0_1] : memref<2x256xf32, #tpu.memory_space<vmem>>, vector<1x256xf32>
    %c0_2 = arith.constant 0 : index
    %c0_3 = arith.constant 0 : index
    %2 = vector.load %arg2[%c0_2, %c0_3] : memref<16x256xf32, #tpu.memory_space<vmem>>, vector<16x256xf32>
    %c0_4 = arith.constant 0 : index
    %c0_5 = arith.constant 0 : index
    %3 = vector.load %arg3[%c0_4, %c0_5] : memref<256x16xf32, #tpu.memory_space<vmem>>, vector<256x16xf32>
    %4 = tpu.iota {dimensions = array<i32: 0>} : vector<16x256xi32>
    %5 = tpu.iota {dimensions = array<i32: 0>} : vector<16x256xi32>
    %c0_6 = arith.constant 0 : index
    %c0_7 = arith.constant 0 : index
    %c0_8 = arith.constant 0 : index
    %6 = vector.load %arg4[%c0_6, %c0_7, %c0_8] : memref<1x2x256xf32, #tpu.memory_space<vmem>>, vector<1x2x256xf32>
    %7 = vector.shape_cast %6 : vector<1x2x256xf32> to vector<2x256xf32>
    %cst = arith.constant 6.250000e-02 : f32
    %8 = vector.broadcast %cst : f32 to vector<2x256xf32>
    %9 = arith.mulf %7, %8 : vector<2x256xf32>
    %c0_i32 = arith.constant 0 : i32
    %c4_i32 = arith.constant 4 : i32
    %10 = arith.addi %c0_i32, %c4_i32 : i32
    %c1_i32 = arith.constant 1 : i32
    %11 = scf.for %arg6 = %c0_i32 to %10 step %c1_i32 iter_args(%arg7 = %9) -> (vector<2x256xf32>)  : i32 {
      %15 = vector.extract_strided_slice %arg7 {offsets = [0, 0], sizes = [1, 256], strides = [1, 1]} : vector<2x256xf32> to vector<1x256xf32>
      %16 = arith.addf %0, %15 : vector<1x256xf32>
      %17 = vector.extract_strided_slice %arg7 {offsets = [1, 0], sizes = [1, 256], strides = [1, 1]} : vector<2x256xf32> to vector<1x256xf32>
      %18 = arith.addf %1, %17 : vector<1x256xf32>
      %19 = math.floor %16 : vector<1x256xf32>
      %20 = math.floor %18 : vector<1x256xf32>
      %21 = arith.subf %16, %19 : vector<1x256xf32>
      %cst_12 = arith.constant 1.000000e+00 : f32
      %22 = vector.broadcast %cst_12 : f32 to vector<1x256xf32>
      %23 = arith.subf %22, %21 : vector<1x256xf32>
      %24 = arith.subf %18, %20 : vector<1x256xf32>
      %cst_13 = arith.constant 1.000000e+00 : f32
      %25 = vector.broadcast %cst_13 : f32 to vector<1x256xf32>
      %26 = arith.subf %25, %24 : vector<1x256xf32>
      %27 = arith.fptosi %19 : vector<1x256xf32> to vector<1x256xi32>
      %28 = arith.fptosi %20 : vector<1x256xf32> to vector<1x256xi32>
      %29 = vector.broadcast %27 : vector<1x256xi32> to vector<16x256xi32>
      %30 = arith.cmpi eq, %4, %29 : vector<16x256xi32>
      %cst_14 = arith.constant 0.000000e+00 : f32
      %31 = vector.shape_cast %23 : vector<1x256xf32> to vector<1x256xf32>
      %32 = vector.broadcast %31 : vector<1x256xf32> to vector<16x256xf32>
      %33 = vector.broadcast %cst_14 : f32 to vector<16x256xf32>
      %34 = arith.select %30, %32, %33 : vector<16x256xi1>, vector<16x256xf32>
      %c1_i32_15 = arith.constant 1 : i32
      %35 = vector.broadcast %c1_i32_15 : i32 to vector<1x256xi32>
      %36 = arith.addi %27, %35 : vector<1x256xi32>
      %37 = vector.broadcast %36 : vector<1x256xi32> to vector<16x256xi32>
      %38 = arith.cmpi eq, %4, %37 : vector<16x256xi32>
      %cst_16 = arith.constant 0.000000e+00 : f32
      %39 = vector.shape_cast %21 : vector<1x256xf32> to vector<1x256xf32>
      %40 = vector.broadcast %39 : vector<1x256xf32> to vector<16x256xf32>
      %41 = vector.broadcast %cst_16 : f32 to vector<16x256xf32>
      %42 = arith.select %38, %40, %41 : vector<16x256xi1>, vector<16x256xf32>
      %43 = arith.addf %34, %42 : vector<16x256xf32>
      %44 = vector.broadcast %28 : vector<1x256xi32> to vector<16x256xi32>
      %45 = arith.cmpi eq, %5, %44 : vector<16x256xi32>
      %cst_17 = arith.constant 0.000000e+00 : f32
      %46 = vector.shape_cast %26 : vector<1x256xf32> to vector<1x256xf32>
      %47 = vector.broadcast %46 : vector<1x256xf32> to vector<16x256xf32>
      %48 = vector.broadcast %cst_17 : f32 to vector<16x256xf32>
      %49 = arith.select %45, %47, %48 : vector<16x256xi1>, vector<16x256xf32>
      %c1_i32_18 = arith.constant 1 : i32
      %50 = vector.broadcast %c1_i32_18 : i32 to vector<1x256xi32>
      %51 = arith.addi %28, %50 : vector<1x256xi32>
      %52 = vector.broadcast %51 : vector<1x256xi32> to vector<16x256xi32>
      %53 = arith.cmpi eq, %5, %52 : vector<16x256xi32>
      %cst_19 = arith.constant 0.000000e+00 : f32
      %54 = vector.shape_cast %24 : vector<1x256xf32> to vector<1x256xf32>
      %55 = vector.broadcast %54 : vector<1x256xf32> to vector<16x256xf32>
      %56 = vector.broadcast %cst_19 : f32 to vector<16x256xf32>
      %57 = arith.select %53, %55, %56 : vector<16x256xi1>, vector<16x256xf32>
      %58 = arith.addf %49, %57 : vector<16x256xf32>
      %59 = vector.extract_strided_slice %arg7 {offsets = [0, 0], sizes = [1, 256], strides = [1, 1]} : vector<2x256xf32> to vector<1x256xf32>
      %60 = vector.broadcast %59 : vector<1x256xf32> to vector<16x256xf32>
      %61 = arith.mulf %60, %2 : vector<16x256xf32>
      %62 = vector.extract_strided_slice %arg7 {offsets = [1, 0], sizes = [1, 256], strides = [1, 1]} : vector<2x256xf32> to vector<1x256xf32>
      %63 = vector.broadcast %62 : vector<1x256xf32> to vector<16x256xf32>
      %64 = arith.mulf %63, %2 : vector<16x256xf32>
      %65 = tpu.concatenate %61, %64 in 0 : vector<16x256xf32>, vector<16x256xf32> -> vector<32x256xf32>
      %cst_20 = arith.constant dense<0.000000e+00> : vector<32x16xf32>
      %66 = tpu.matmul %65, %3, %cst_20 {dimension_numbers = #tpu.dot_dimension_numbers<[1], [0], [0], [1], [0, 0, 1, 1], [], []>, precision = #tpu.contract_precision<fp32>} : vector<32x256xf32>, vector<256x16xf32>, vector<32x16xf32> -> vector<32x16xf32>
      %cst_21 = arith.constant dense<0.000000e+00> : vector<32x256xf32>
      %67 = tpu.matmul %66, %43, %cst_21 {dimension_numbers = #tpu.dot_dimension_numbers<[1], [0], [0], [1], [0, 0, 1, 1], [], []>, precision = #tpu.contract_precision<fp32>} : vector<32x16xf32>, vector<16x256xf32>, vector<32x256xf32> -> vector<32x256xf32>
      %68 = vector.extract_strided_slice %67 {offsets = [0, 0], sizes = [16, 256], strides = [1, 1]} : vector<32x256xf32> to vector<16x256xf32>
      %69 = arith.mulf %68, %58 : vector<16x256xf32>
      %cst_22 = arith.constant dense<0.000000e+00> : vector<256xf32>
      %70 = vector.multi_reduction <add>, %69, %cst_22 [0] : vector<16x256xf32> to vector<256xf32>
      %71 = vector.shape_cast %70 : vector<256xf32> to vector<1x256xf32>
      %72 = vector.extract_strided_slice %67 {offsets = [16, 0], sizes = [16, 256], strides = [1, 1]} : vector<32x256xf32> to vector<16x256xf32>
      %73 = arith.mulf %72, %58 : vector<16x256xf32>
      %cst_23 = arith.constant dense<0.000000e+00> : vector<256xf32>
      %74 = vector.multi_reduction <add>, %73, %cst_23 [0] : vector<16x256xf32> to vector<256xf32>
      %75 = vector.shape_cast %74 : vector<256xf32> to vector<1x256xf32>
      %76 = tpu.concatenate %71, %75 in 0 : vector<1x256xf32>, vector<1x256xf32> -> vector<2x256xf32>
      %77 = arith.addf %arg7, %76 : vector<2x256xf32>
      scf.yield %77 : vector<2x256xf32>
    }
    %c0_9 = arith.constant 0 : index
    %c0_10 = arith.constant 0 : index
    %c0_11 = arith.constant 0 : index
    %12 = vector.load %arg5[%c0_9, %c0_10, %c0_11] : memref<1x2x256xf32, #tpu.memory_space<vmem>>, vector<1x2x256xf32>
    %13 = vector.shape_cast %12 : vector<1x2x256xf32> to vector<2x256xf32>
    %14 = vector.shape_cast %11 : vector<2x256xf32> to vector<1x2x256xf32>
    tpu.vector_store %arg5[%c0_9, %c0_10, %c0_11], %14 {strides = array<i32>} : memref<1x2x256xf32, #tpu.memory_space<vmem>>, vector<1x2x256xf32>,
    return
  }
  func.func @transform_0(%arg0: i32) -> (i32, i32) {
    %c0_i32 = arith.constant 0 : i32
    %c0_i32_0 = arith.constant 0 : i32
    %c0_i32_1 = arith.constant 0 : i32
    return %c0_i32, %c0_i32_0 : i32, i32
  }
  func.func @transform_1(%arg0: i32) -> (i32, i32) {
    %c0_i32 = arith.constant 0 : i32
    %c0_i32_0 = arith.constant 0 : i32
    %c0_i32_1 = arith.constant 0 : i32
    return %c0_i32, %c0_i32_0 : i32, i32
  }
  func.func @transform_2(%arg0: i32) -> (i32, i32) {
    %c0_i32 = arith.constant 0 : i32
    %c0_i32_0 = arith.constant 0 : i32
    %c0_i32_1 = arith.constant 0 : i32
    return %c0_i32, %c0_i32_0 : i32, i32
  }
  func.func @transform_3(%arg0: i32) -> (i32, i32, i32) {
    %c0_i32 = arith.constant 0 : i32
    %c0_i32_0 = arith.constant 0 : i32
    %c0_i32_1 = arith.constant 0 : i32
    return %arg0, %c0_i32, %c0_i32_0 : i32, i32, i32
  }
  func.func @transform_4(%arg0: i32) -> (i32, i32, i32) {
    %c0_i32 = arith.constant 0 : i32
    %c0_i32_0 = arith.constant 0 : i32
    %c0_i32_1 = arith.constant 0 : i32
    return %arg0, %c0_i32, %c0_i32_0 : i32, i32, i32
  }
}

</mosaic_0001>

<llo_original>
// kernel: tpu_custom_call.1
$region0: #{tpu_custom_call.1}
  #allocation0 [shape = 'u32[]', space=smem, size = 0x4, offset = 0x4, fixed_abs, tag = 'smem constant byte address 0x4 - core index']
  #allocation1 [shape = 'u32[144,128]{1,0:T(1,128)}', space=vmem, size = 0x12000, scoped, tag = 'internal scratch']
  %s0 = inlined_call_operand.vmem [shape: f32[2,256], index: 0, kind: input, shape index: {}]
  %s1 = inlined_call_operand.vmem [shape: f32[16,256], index: 1, kind: input, shape index: {}]
  %s2 = inlined_call_operand.vmem [shape: f32[256,16], index: 2, kind: input, shape index: {}]
  %s3 = inlined_call_operand.vmem [shape: f32[2,2,256], index: 3, kind: input, shape index: {}]
  %s4 = inlined_call_operand.hbm [shape: f32[2,2,256], index: 4, kind: output, shape index: {}]
  %s5 = sld [smem:[#allocation0]]
  $region56: #{tpu_custom_call.1} parent=0
    _
  %s7 = ssub.s32 1, %s5
  %s8 = scalar_select 0, %s7, %s5
  $region1: #{tpu_custom_call.1} parent=0
    #allocation2 [shape = 'u8[4096]{0}', space=vmem, size = 0x1000, scoped, tag = 'output window, operand 0']
    #allocation3 [shape = 's32[2]{0}', space=sflag, size = 0x8, scoped, tag = 'scoped memory for tpu_custom_call.1']
    %9 = vsyncpa [#allocation3], 0
    %s10 = scalar_lea.sflag [#allocation3], 1
    %11 = vsyncpa %s10, 0
    loop: start=0, step=1, limit=4
    $region2: #{tpu_custom_call.1} parent=1 // loop_pre_header
      _
    $region3: #{tpu_custom_call.1} parent=1 // loop_header
      %s13 = sphi 0, %s17
      %p14 = scmp.ge.s32.totalorder %s13, 4
      %s21 = sphi 0, %s21
      %s23 = sphi 0, %s21
      %s24 = sphi 0, %s23
      %s38 = sphi 0, %s24
      %s42 = sphi 0, %s42
      %s44 = sphi 0, %s42
      %s45 = sphi 0, %s44
      %s59 = sphi 0, %s45
      %s63 = sphi 0, %s63
      %s65 = sphi 0, %s63
      %s66 = sphi 0, %s65
      %s80 = sphi 0, %s66
      %s86 = sphi 0, %s88
      %s89 = sphi 0, %s86
      %s90 = sphi 0, %s89
      %s106 = sphi 0, %s90
      %s112 = sphi 0, %s114
      %s115 = sphi 0, %s112
      %s116 = sphi 0, %s115
      %s132 = sphi 0, %s116
    $region4: #{tpu_custom_call.1} parent=1 // loop_header_branch
      %16 = sbr.rel (%p14) target = $region8
    $region5: #{tpu_custom_call.1} parent=1 // loop_body
      %s18 = ssub.s32 %s13, 1
      %s19 = ssub.s32 %s13, 2
      %s20 = sadd.s32 %s13, 1
      %s22 = sadd.s32 %s21, 1
      %p25 = scmp.eq.s32.totalorder %s13, 1
      %p26 = scmp.ne.s32.totalorder %s21, %s23
      %p27 = scmp.eq.s32.totalorder %s13, 0
      %p28 = por %p26, %p27
      %p29 = scmp.ne.s32.totalorder %s21, %s23
      %p30 = scmp.eq.s32.totalorder %s18, 1
      %p31 = por %p29, %p30
      %p32 = scmp.ne.s32.totalorder %s23, %s24
      %p33 = scmp.eq.s32.totalorder %s18, 0
      %p34 = por %p32, %p33
      %p35 = scmp.ne.s32.totalorder %s23, %s24
      %p36 = scmp.eq.s32.totalorder %s19, 1
      %p37 = por %p35, %p36
      %p39 = scmp.ne.s32.totalorder %s24, %s38
      %p40 = scmp.eq.s32.totalorder %s19, 0
      %p41 = por %p39, %p40
      %s43 = sadd.s32 %s42, 1
      %p46 = scmp.eq.s32.totalorder %s13, 1
      %p47 = scmp.ne.s32.totalorder %s42, %s44
      %p48 = scmp.eq.s32.totalorder %s13, 0
      %p49 = por %p47, %p48
      %p50 = scmp.ne.s32.totalorder %s42, %s44
      %p51 = scmp.eq.s32.totalorder %s18, 1
      %p52 = por %p50, %p51
      %p53 = scmp.ne.s32.totalorder %s44, %s45
      %p54 = scmp.eq.s32.totalorder %s18, 0
      %p55 = por %p53, %p54
      %p56 = scmp.ne.s32.totalorder %s44, %s45
      %p57 = scmp.eq.s32.totalorder %s19, 1
      %p58 = por %p56, %p57
      %p60 = scmp.ne.s32.totalorder %s45, %s59
      %p61 = scmp.eq.s32.totalorder %s19, 0
      %p62 = por %p60, %p61
      %s64 = sadd.s32 %s63, 1
      %p67 = scmp.eq.s32.totalorder %s13, 1
      %p68 = scmp.ne.s32.totalorder %s63, %s65
      %p69 = scmp.eq.s32.totalorder %s13, 0
      %p70 = por %p68, %p69
      %p71 = scmp.ne.s32.totalorder %s63, %s65
      %p72 = scmp.eq.s32.totalorder %s18, 1
      %p73 = por %p71, %p72
      %p74 = scmp.ne.s32.totalorder %s65, %s66
      %p75 = scmp.eq.s32.totalorder %s18, 0
      %p76 = por %p74, %p75
      %p77 = scmp.ne.s32.totalorder %s65, %s66
      %p78 = scmp.eq.s32.totalorder %s19, 1
      %p79 = por %p77, %p78
      %p81 = scmp.ne.s32.totalorder %s66, %s80
      %p82 = scmp.eq.s32.totalorder %s19, 0
      %p83 = por %p81, %p82
      %s84 = ssub.s32 %s13, %s20
      %p85 = scmp.eq.s32.totalorder %s84, 0
      %s87 = sadd.s32 %s86, 1
      %s88 = scalar_select %p85, %s86, %s87
      %p91 = pneg %p85
      %p92 = scmp.eq.s32.totalorder %s13, 1
      %p93 = por %p91, %p92
      %p94 = scmp.ne.s32.totalorder %s86, %s89
      %p95 = scmp.eq.s32.totalorder %s13, 0
      %p96 = por %p94, %p95
      %p97 = scmp.ne.s32.totalorder %s86, %s89
      %p98 = scmp.eq.s32.totalorder %s18, 1
      %p99 = por %p97, %p98
      %p100 = scmp.ne.s32.totalorder %s89, %s90
      %p101 = scmp.eq.s32.totalorder %s18, 0
      %p102 = por %p100, %p101
      %p103 = scmp.ne.s32.totalorder %s89, %s90
      %p104 = scmp.eq.s32.totalorder %s19, 1
      %p105 = por %p103, %p104
      %p107 = scmp.ne.s32.totalorder %s90, %s106
      %p108 = scmp.eq.s32.totalorder %s19, 0
      %p109 = por %p107, %p108
      %s110 = ssub.s32 %s13, %s20
      %p111 = scmp.eq.s32.totalorder %s110, 0
      %s113 = sadd.s32 %s112, 1
      %s114 = scalar_select %p111, %s112, %s113
      %p117 = pneg %p111
      %p118 = scmp.eq.s32.totalorder %s13, 1
      %p119 = por %p117, %p118
      %p120 = scmp.ne.s32.totalorder %s112, %s115
      %p121 = scmp.eq.s32.totalorder %s13, 0
      %p122 = por %p120, %p121
      %p123 = scmp.ne.s32.totalorder %s112, %s115
      %p124 = scmp.eq.s32.totalorder %s18, 1
      %p125 = por %p123, %p124
      %p126 = scmp.ne.s32.totalorder %s115, %s116
      %p127 = scmp.eq.s32.totalorder %s18, 0
      %p128 = por %p126, %p127
      %p129 = scmp.ne.s32.totalorder %s115, %s116
      %p130 = scmp.eq.s32.totalorder %s19, 1
      %p131 = por %p129, %p130
      %p133 = scmp.ne.s32.totalorder %s116, %s132
      %p134 = scmp.eq.s32.totalorder %s19, 0
      %p135 = por %p133, %p134
      %p136 = scmp.le.s32.totalorder 1, %s13
      %p137 = scmp.lt.s32.totalorder %s13, 3
      %p138 = pnand %p136, %p137
      %p139 = pneg %p138
      // Predicated region
      $region9: #{tpu_custom_call.1} parent=5 // pred_check
        _
      $region10: #{tpu_custom_call.1} parent=5 // pred_check_branch
        %141 = sbr.rel (%p138) target = $region12
      $region11: #{tpu_custom_call.1} parent=5 // pred_region
        %s142 = ssub.s32 %s13, 1
        // Predicated region
        $region13: #{tpu_custom_call.1} parent=11 // pred_check
          %p143 = pneg %p34
        $region14: #{tpu_custom_call.1} parent=11 // pred_check_branch
          %145 = sbr.rel (%p143) target = $region16
        $region15: #{tpu_custom_call.1} parent=11 // pred_region
          _
        $region16: #{tpu_custom_call.1} parent=11 // pred_fallthru
          _
        // Predicated region
        $region17: #{tpu_custom_call.1} parent=11 // pred_check
          %p146 = pneg %p55
        $region18: #{tpu_custom_call.1} parent=11 // pred_check_branch
          %148 = sbr.rel (%p146) target = $region20
        $region19: #{tpu_custom_call.1} parent=11 // pred_region
          _
        $region20: #{tpu_custom_call.1} parent=11 // pred_fallthru
          _
        // Predicated region
        $region21: #{tpu_custom_call.1} parent=11 // pred_check
          %p149 = pneg %p76
        $region22: #{tpu_custom_call.1} parent=11 // pred_check_branch
          %151 = sbr.rel (%p149) target = $region24
        $region23: #{tpu_custom_call.1} parent=11 // pred_region
          _
        $region24: #{tpu_custom_call.1} parent=11 // pred_fallthru
          _
      $region12: #{tpu_custom_call.1} parent=5 // pred_fallthru
        _
      %p152 = scmp.lt.s32.totalorder %s13, 2
      // Predicated region
      $region25: #{tpu_custom_call.1} parent=5 // pred_check
        %p153 = pneg %p152
      $region26: #{tpu_custom_call.1} parent=5 // pred_check_branch
        %155 = sbr.rel (%p153) target = $region28
      $region27: #{tpu_custom_call.1} parent=5 // pred_region
        // Predicated region
        $region29: #{tpu_custom_call.1} parent=27 // pred_check
          %p156 = pneg %p96
        $region30: #{tpu_custom_call.1} parent=27 // pred_check_branch
          %158 = sbr.rel (%p156) target = $region32
        $region31: #{tpu_custom_call.1} parent=27 // pred_region
          %p159 = scmp.lt.s32.totalorder %s13, 1
          %s160 = scalar_select %p159, %s13, 1
          %s161 = smul.addr %s160, 2
          %s162 = smul.addr %s161, 2
          %s163 = scalar_lea.vmem %s3, %s162
        $region32: #{tpu_custom_call.1} parent=27 // pred_fallthru
          _
      $region28: #{tpu_custom_call.1} parent=5 // pred_fallthru
        _
      %p164 = scmp.le.s32.totalorder 1, %s13
      %p165 = scmp.lt.s32.totalorder %s13, 3
      %p166 = pnand %p164, %p165
      %p167 = pneg %p166
      // Predicated region
      $region33: #{tpu_custom_call.1} parent=5 // pred_check
        _
      $region34: #{tpu_custom_call.1} parent=5 // pred_check_branch
        %169 = sbr.rel (%p166) target = $region36
      $region35: #{tpu_custom_call.1} parent=5 // pred_region
        %s170 = ssub.s32 %s13, 1
        %p171 = pneg %p34
        %p172 = pneg %p31
        %p173 = pneg %p55
        %p174 = pneg %p52
        %p175 = pneg %p76
        %p176 = pneg %p73
        %p177 = scmp.lt.s32.totalorder %s18, 1
        %s178 = scalar_select %p177, %s18, 1
        %s179 = smul.addr %s178, 2
        %s180 = smul.addr %s179, 2
        %s181 = scalar_lea.vmem %s3, %s180
        %p182 = pneg %p102
        %p183 = pneg %p99
        %p184 = pneg %p128
        %p185 = pneg %p125
        %s186 = sand.u32 %s115, 1
        %s187 = scalar_lea.sflag [#allocation3], %s186
        %s188 = sand.u32 %s115, 1
        %s189 = smul.addr %s188, 4
        %s190 = scalar_lea.vmem [#allocation2], %s189
        %p191 = scmp.lt.s32.totalorder %s18, 1
        %s192 = scalar_select %p191, %s18, 1
        %s193 = smul.addr %s192, 2
        %s194 = smul.addr %s193, 2
        %s195 = scalar_lea.vmem %s3, %s194
        %v196 = vld [vmem:[%s0] ss:$2 sm:$0x3]
        %s197 = scalar_lea.vmem %s0, 1
        %v198 = vld [vmem:[%s197] ss:$2 sm:$0x3]
        %v199 = vld [vmem:[%s1] sm:$0xff]
        %v200 = vld [vmem:[%s1 + $0x8] sm:$0xff]
        %v201 = vld [vmem:[%s1 + $0x10] sm:$0xff]
        %v202 = vld [vmem:[%s1 + $0x18] sm:$0xff]
        %v203 = vld [vmem:[%s2] sm:$0xff]
        %v204 = vld [vmem:[%s2 + $0x8] sm:$0xff]
        %v205 = vld [vmem:[%s2 + $0x10] sm:$0xff]
        %v206 = vld [vmem:[%s2 + $0x18] sm:$0xff]
        %v207 = vld [vmem:[%s2 + $0x20] sm:$0xff]
        %v208 = vld [vmem:[%s2 + $0x28] sm:$0xff]
        %v209 = vld [vmem:[%s2 + $0x30] sm:$0xff]
        %v210 = vld [vmem:[%s2 + $0x38] sm:$0xff]
        %v211 = vld [vmem:[%s2 + $0x40] sm:$0xff]
        %v212 = vld [vmem:[%s2 + $0x48] sm:$0xff]
        %v213 = vld [vmem:[%s2 + $0x50] sm:$0xff]
        %v214 = vld [vmem:[%s2 + $0x58] sm:$0xff]
        %v215 = vld [vmem:[%s2 + $0x60] sm:$0xff]
        %v216 = vld [vmem:[%s2 + $0x68] sm:$0xff]
        %v217 = vld [vmem:[%s2 + $0x70] sm:$0xff]
        %v218 = vld [vmem:[%s2 + $0x78] sm:$0xff]
        %v219 = vld [vmem:[%s2 + $0x80] sm:$0xff]
        %v220 = vld [vmem:[%s2 + $0x88] sm:$0xff]
        %v221 = vld [vmem:[%s2 + $0x90] sm:$0xff]
        %v222 = vld [vmem:[%s2 + $0x98] sm:$0xff]
        %v223 = vld [vmem:[%s2 + $0xa0] sm:$0xff]
        %v224 = vld [vmem:[%s2 + $0xa8] sm:$0xff]
        %v225 = vld [vmem:[%s2 + $0xb0] sm:$0xff]
        %v226 = vld [vmem:[%s2 + $0xb8] sm:$0xff]
        %v227 = vld [vmem:[%s2 + $0xc0] sm:$0xff]
        %v228 = vld [vmem:[%s2 + $0xc8] sm:$0xff]
        %v229 = vld [vmem:[%s2 + $0xd0] sm:$0xff]
        %v230 = vld [vmem:[%s2 + $0xd8] sm:$0xff]
        %v231 = vld [vmem:[%s2 + $0xe0] sm:$0xff]
        %v232 = vld [vmem:[%s2 + $0xe8] sm:$0xff]
        %v233 = vld [vmem:[%s2 + $0xf0] sm:$0xff]
        %v234 = vld [vmem:[%s2 + $0xf8] sm:$0xff]
        %v235 = vlaneseq
        %v236 = vshrl.u32 %v235, 7
        %v237 = vadd.s32 %v236, 8
        %v238 = vld [vmem:[%s195] sm:$0xf]
        %v239 = vmul.f32 %v238, 0.0625
        loop: start=0, step=1, limit=4
        $region37: #{tpu_custom_call.1} parent=35 // loop_pre_header
          _
        $region38: #{tpu_custom_call.1} parent=35 // loop_header
          %s241 = sphi 0, %s245
          %p242 = scmp.ge.s32.totalorder %s241, 4
          %v246 = vphi %v239, %v2161
        $region39: #{tpu_custom_call.1} parent=35 // loop_header_branch
          %244 = sbr.rel (%p242) target = $region43
        $region40: #{tpu_custom_call.1} parent=35 // loop_body
          %v249 = vunpack.c.l.s4 1966171168
          %v250 = vunpack.c.0.s8 %v249
          %v251 = vlaneseq
          %v252 = vshrl.u32 %v251, 7
          %v253 = vsub.s32 %v250, %v252
          %v254 = vrot.slane %v246, %v253
          %v256 = vadd.f32 %v196, %v254
          %v257 = vcombine.high %v254, %v254
          %v259 = vadd.f32 %v198, %v257
          %v260 = vfloor.f32 %v256
          %v261 = vfloor.f32 %v259
          %v262 = vsub.f32 %v256, %v260
          %v263 = vsub.f32 1.0, %v262
          %v264 = vsub.f32 %v259, %v261
          %v265 = vsub.f32 1.0, %v264
          %v266 = vcvt.f32.s32.to.zero.pseudo %v260
          %v267 = vcvt.f32.s32.to.zero.pseudo %v261
          %v268 = vlaneseq
          %v269 = vshrl.u32 %v268, 7
          %v270 = vsub.s32 0, %v269
          %v271 = vrot.slane %v266, %v270
          %v272 = vlaneseq
          %v273 = vshrl.u32 %v272, 7
          %v274 = vsub.s32 1, %v273
          %v275 = vrot.slane %v266, %v274
          %vm276 = vcmp.eq.s32.totalorder %v236, %v271
          %vm277 = vcmp.eq.s32.totalorder %v236, %v275
          %vm278 = vcmp.eq.s32.totalorder %v237, %v271
          %vm279 = vcmp.eq.s32.totalorder %v237, %v275
          %v281 = vlaneseq
          %v282 = vshrl.u32 %v281, 7
          %v283 = vsub.s32 0, %v282
          %v284 = vrot.slane %v263, %v283
          %v285 = vlaneseq
          %v286 = vshrl.u32 %v285, 7
          %v287 = vsub.s32 1, %v286
          %v288 = vrot.slane %v263, %v287
          %v291 = vsel %vm276, %v284, 0.0
          %v292 = vsel %vm277, %v288, 0.0
          %v293 = vsel %vm278, %v284, 0.0
          %v294 = vsel %vm279, %v288, 0.0
          %v295 = vadd.s32 %v266, 1
          %v296 = vlaneseq
          %v297 = vshrl.u32 %v296, 7
          %v298 = vsub.s32 0, %v297
          %v299 = vrot.slane %v295, %v298
          %v300 = vlaneseq
          %v301 = vshrl.u32 %v300, 7
          %v302 = vsub.s32 1, %v301
          %v303 = vrot.slane %v295, %v302
          %vm304 = vcmp.eq.s32.totalorder %v236, %v299
          %vm305 = vcmp.eq.s32.totalorder %v236, %v303
          %vm306 = vcmp.eq.s32.totalorder %v237, %v299
          %vm307 = vcmp.eq.s32.totalorder %v237, %v303
          %v309 = vlaneseq
          %v310 = vshrl.u32 %v309, 7
          %v311 = vsub.s32 0, %v310
          %v312 = vrot.slane %v262, %v311
          %v313 = vlaneseq
          %v314 = vshrl.u32 %v313, 7
          %v315 = vsub.s32 1, %v314
          %v316 = vrot.slane %v262, %v315
          %v319 = vsel %vm304, %v312, 0.0
          %v320 = vsel %vm305, %v316, 0.0
          %v321 = vsel %vm306, %v312, 0.0
          %v322 = vsel %vm307, %v316, 0.0
          %v323 = vadd.f32 %v291, %v319
          %v324 = vadd.f32 %v292, %v320
          %v325 = vadd.f32 %v293, %v321
          %v326 = vadd.f32 %v294, %v322
          %v327 = vlaneseq
          %v328 = vshrl.u32 %v327, 7
          %v329 = vsub.s32 0, %v328
          %v330 = vrot.slane %v267, %v329
          %v331 = vlaneseq
          %v332 = vshrl.u32 %v331, 7
          %v333 = vsub.s32 1, %v332
          %v334 = vrot.slane %v267, %v333
          %vm335 = vcmp.eq.s32.totalorder %v236, %v330
          %vm336 = vcmp.eq.s32.totalorder %v236, %v334
          %vm337 = vcmp.eq.s32.totalorder %v237, %v330
          %vm338 = vcmp.eq.s32.totalorder %v237, %v334
          %v340 = vlaneseq
          %v341 = vshrl.u32 %v340, 7
          %v342 = vsub.s32 0, %v341
          %v343 = vrot.slane %v265, %v342
          %v344 = vlaneseq
          %v345 = vshrl.u32 %v344, 7
          %v346 = vsub.s32 1, %v345
          %v347 = vrot.slane %v265, %v346
          %v350 = vsel %vm335, %v343, 0.0
          %v351 = vsel %vm336, %v347, 0.0
          %v352 = vsel %vm337, %v343, 0.0
          %v353 = vsel %vm338, %v347, 0.0
          %v354 = vadd.s32 %v267, 1
          %v355 = vlaneseq
          %v356 = vshrl.u32 %v355, 7
          %v357 = vsub.s32 0, %v356
          %v358 = vrot.slane %v354, %v357
          %v359 = vlaneseq
          %v360 = vshrl.u32 %v359, 7
          %v361 = vsub.s32 1, %v360
          %v362 = vrot.slane %v354, %v361
          %vm363 = vcmp.eq.s32.totalorder %v236, %v358
          %vm364 = vcmp.eq.s32.totalorder %v236, %v362
          %vm365 = vcmp.eq.s32.totalorder %v237, %v358
          %vm366 = vcmp.eq.s32.totalorder %v237, %v362
          %v368 = vlaneseq
          %v369 = vshrl.u32 %v368, 7
          %v370 = vsub.s32 0, %v369
          %v371 = vrot.slane %v264, %v370
          %v372 = vlaneseq
          %v373 = vshrl.u32 %v372, 7
          %v374 = vsub.s32 1, %v373
          %v375 = vrot.slane %v264, %v374
          %v378 = vsel %vm363, %v371, 0.0
          %v379 = vsel %vm364, %v375, 0.0
          %v380 = vsel %vm365, %v371, 0.0
          %v381 = vsel %vm366, %v375, 0.0
          %v382 = vadd.f32 %v350, %v378
          %v383 = vadd.f32 %v351, %v379
          %v384 = vadd.f32 %v352, %v380
          %v385 = vadd.f32 %v353, %v381
          %v386 = vlaneseq
          %v387 = vshrl.u32 %v386, 7
          %v388 = vsub.s32 0, %v387
          %v389 = vrot.slane %v246, %v388
          %v390 = vlaneseq
          %v391 = vshrl.u32 %v390, 7
          %v392 = vsub.s32 2, %v391
          %v393 = vrot.slane %v246, %v392
          %v396 = vlaneseq
          %v397 = vshrl.u32 %v396, 7
          %v398 = vsub.s32 0, %v397
          %v399 = vrot.slane %v389, %v398
          %v400 = vlaneseq
          %v401 = vshrl.u32 %v400, 7
          %v402 = vsub.s32 0, %v401
          %v403 = vrot.slane %v393, %v402
          %v404 = vmul.f32 %v399, %v199
          %v405 = vmul.f32 %v403, %v200
          %v406 = vmul.f32 %v399, %v201
          %v407 = vmul.f32 %v403, %v202
          %v408 = vlaneseq
          %v409 = vshrl.u32 %v408, 7
          %v410 = vsub.s32 1, %v409
          %v411 = vrot.slane %v246, %v410
          %v412 = vlaneseq
          %v413 = vshrl.u32 %v412, 7
          %v414 = vsub.s32 3, %v413
          %v415 = vrot.slane %v246, %v414
          %v418 = vlaneseq
          %v419 = vshrl.u32 %v418, 7
          %v420 = vsub.s32 1, %v419
          %v421 = vrot.slane %v411, %v420
          %v422 = vlaneseq
          %v423 = vshrl.u32 %v422, 7
          %v424 = vsub.s32 1, %v423
          %v425 = vrot.slane %v415, %v424
          %v426 = vmul.f32 %v421, %v199
          %v427 = vmul.f32 %v425, %v200
          %v428 = vmul.f32 %v421, %v201
          %v429 = vmul.f32 %v425, %v202
          %430 = vmatprep.subr.mxu0 0.0
          %v431 = vand.u32 %v203, 4294901760
          %432 = vmatpush1.msra.mxu0 %v431
          %433 = vmatprep.subr.mxu0 0.0
          %v434 = vand.u32 %v204, 4294901760
          %435 = vmatpush1.msra.mxu0 %v434
          %436 = vmatprep.subr.mxu0 0.0
          %v437 = vand.u32 %v205, 4294901760
          %438 = vmatpush1.msra.mxu0 %v437
          %439 = vmatprep.subr.mxu0 0.0
          %v440 = vand.u32 %v206, 4294901760
          %441 = vmatpush1.msra.mxu0 %v440
          %442 = vmatprep.subr.mxu0 0.0
          %v443 = vand.u32 %v207, 4294901760
          %444 = vmatpush1.msra.mxu0 %v443
          %445 = vmatprep.subr.mxu0 0.0
          %v446 = vand.u32 %v208, 4294901760
          %447 = vmatpush1.msra.mxu0 %v446
          %448 = vmatprep.subr.mxu0 0.0
          %v449 = vand.u32 %v209, 4294901760
          %450 = vmatpush1.msra.mxu0 %v449
          %451 = vmatprep.subr.mxu0 0.0
          %v452 = vand.u32 %v210, 4294901760
          %453 = vmatpush1.msra.mxu0 %v452
          %454 = vmatprep.subr.mxu0 0.0
          %v455 = vand.u32 %v211, 4294901760
          %456 = vmatpush1.msra.mxu0 %v455
          %457 = vmatprep.subr.mxu0 0.0
          %v458 = vand.u32 %v212, 4294901760
          %459 = vmatpush1.msra.mxu0 %v458
          %460 = vmatprep.subr.mxu0 0.0
          %v461 = vand.u32 %v213, 4294901760
          %462 = vmatpush1.msra.mxu0 %v461
          %463 = vmatprep.subr.mxu0 0.0
          %v464 = vand.u32 %v214, 4294901760
          %465 = vmatpush1.msra.mxu0 %v464
          %466 = vmatprep.subr.mxu0 0.0
          %v467 = vand.u32 %v215, 4294901760
          %468 = vmatpush1.msra.mxu0 %v467
          %469 = vmatprep.subr.mxu0 0.0
          %v470 = vand.u32 %v216, 4294901760
          %471 = vmatpush1.msra.mxu0 %v470
          %472 = vmatprep.subr.mxu0 0.0
          %v473 = vand.u32 %v217, 4294901760
          %474 = vmatpush1.msra.mxu0 %v473
          %475 = vmatprep.subr.mxu0 0.0
          %v476 = vand.u32 %v218, 4294901760
          %477 = vmatpush1.msra.mxu0 %v476
          %478 = vmatprep.subr.mxu0 0.0
          %v479 = vand.u32 %v219, 4294901760
          %480 = vmatpush1.msra.mxu0 %v479
          %481 = vmatprep.subr.mxu0 0.0
          %v482 = vand.u32 %v220, 4294901760
          %483 = vmatpush1.msra.mxu0 %v482
          %484 = vmatprep.subr.mxu0 0.0
          %v485 = vand.u32 %v221, 4294901760
          %486 = vmatpush1.msra.mxu0 %v485
          %487 = vmatprep.subr.mxu0 0.0
          %v488 = vand.u32 %v222, 4294901760
          %489 = vmatpush1.msra.mxu0 %v488
          %490 = vmatprep.subr.mxu0 0.0
          %v491 = vand.u32 %v223, 4294901760
          %492 = vmatpush1.msra.mxu0 %v491
          %493 = vmatprep.subr.mxu0 0.0
          %v494 = vand.u32 %v224, 4294901760
          %495 = vmatpush1.msra.mxu0 %v494
          %496 = vmatprep.subr.mxu0 0.0
          %v497 = vand.u32 %v225, 4294901760
          %498 = vmatpush1.msra.mxu0 %v497
          %499 = vmatprep.subr.mxu0 0.0
          %v500 = vand.u32 %v226, 4294901760
          %501 = vmatpush1.msra.mxu0 %v500
          %502 = vmatprep.subr.mxu0 0.0
          %v503 = vand.u32 %v227, 4294901760
          %504 = vmatpush1.msra.mxu0 %v503
          %505 = vmatprep.subr.mxu0 0.0
          %v506 = vand.u32 %v228, 4294901760
          %507 = vmatpush1.msra.mxu0 %v506
          %508 = vmatprep.subr.mxu0 0.0
          %v509 = vand.u32 %v229, 4294901760
          %510 = vmatpush1.msra.mxu0 %v509
          %511 = vmatprep.subr.mxu0 0.0
          %v512 = vand.u32 %v230, 4294901760
          %513 = vmatpush1.msra.mxu0 %v512
          %514 = vmatprep.subr.mxu0 0.0
          %v515 = vand.u32 %v231, 4294901760
          %516 = vmatpush1.msra.mxu0 %v515
          %517 = vmatprep.subr.mxu0 0.0
          %v518 = vand.u32 %v232, 4294901760
          %519 = vmatpush1.msra.mxu0 %v518
          %520 = vmatprep.subr.mxu0 0.0
          %v521 = vand.u32 %v233, 4294901760
          %522 = vmatpush1.msra.mxu0 %v521
          %523 = vmatprep.subr.mxu0 0.0
          %v524 = vand.u32 %v234, 4294901760
          %525 = vmatpush1.msra.mxu0 %v524
          %v526 = vand.u32 %v405, 4294901760
          %v527 = vsub.f32 %v405, %v526
          %v528 = vand.u32 %v527, 4294901760
          %v529 = vsub.f32 %v527, %v528
          %v530 = vand.u32 %v529, 4294901760
          %531 = vmatprep.mubr.f32.mxu0 %v530
          %v532 = vand.u32 %v404, 4294901760
          %v533 = vsub.f32 %v404, %v532
          %v534 = vand.u32 %v533, 4294901760
          %v535 = vsub.f32 %v533, %v534
          %v536 = vand.u32 %v535, 4294901760
          %537 = vmatmul.mubr.f32.gmra.mrb[0].mxu0 %v536
          %v538 = vpop.f32.mrb[0].mxu0
          %v539 = vadd.f32 0.0, %v538
          %v540 = vpop.f32.mrb[0].mxu0
          %v541 = vand.u32 %v407, 4294901760
          %v542 = vsub.f32 %v407, %v541
          %v543 = vand.u32 %v542, 4294901760
          %v544 = vsub.f32 %v542, %v543
          %v545 = vand.u32 %v544, 4294901760
          %546 = vmatprep.mubr.f32.mxu0 %v545
          %v547 = vand.u32 %v406, 4294901760
          %v548 = vsub.f32 %v406, %v547
          %v549 = vand.u32 %v548, 4294901760
          %v550 = vsub.f32 %v548, %v549
          %v551 = vand.u32 %v550, 4294901760
          %552 = vmatmul.mubr.f32.gmra.mrb[0].mxu0 %v551
          %v553 = vpop.f32.mrb[0].mxu0
          %v554 = vadd.f32 0.0, %v553
          %v555 = vpop.f32.mrb[0].mxu0
          %v556 = vand.u32 %v427, 4294901760
          %v557 = vsub.f32 %v427, %v556
          %v558 = vand.u32 %v557, 4294901760
          %v559 = vsub.f32 %v557, %v558
          %v560 = vand.u32 %v559, 4294901760
          %561 = vmatprep.mubr.f32.mxu0 %v560
          %v562 = vand.u32 %v426, 4294901760
          %v563 = vsub.f32 %v426, %v562
          %v564 = vand.u32 %v563, 4294901760
          %v565 = vsub.f32 %v563, %v564
          %v566 = vand.u32 %v565, 4294901760
          %567 = vmatmul.mubr.f32.gmra.mrb[0].mxu0 %v566
          %v568 = vpop.f32.mrb[0].mxu0
          %v569 = vadd.f32 0.0, %v568
          %v570 = vpop.f32.mrb[0].mxu0
          %v571 = vand.u32 %v429, 4294901760
          %v572 = vsub.f32 %v429, %v571
          %v573 = vand.u32 %v572, 4294901760
          %v574 = vsub.f32 %v572, %v573
          %v575 = vand.u32 %v574, 4294901760
          %576 = vmatprep.mubr.f32.mxu0 %v575
          %v577 = vand.u32 %v428, 4294901760
          %v578 = vsub.f32 %v428, %v577
          %v579 = vand.u32 %v578, 4294901760
          %v580 = vsub.f32 %v578, %v579
          %v581 = vand.u32 %v580, 4294901760
          %582 = vmatmul.mubr.f32.gmra.mrb[0].mxu0 %v581
          %v583 = vpop.f32.mrb[0].mxu0
          %v584 = vadd.f32 0.0, %v583
          %v585 = vpop.f32.mrb[0].mxu0
          %586 = vdwg.mxu0
          %587 = vmatprep.subr.mxu0 0.0
          %v588 = vand.u32 %v203, 4294901760
          %v589 = vsub.f32 %v203, %v588
          %v590 = vand.u32 %v589, 4294901760
          %v591 = vsub.f32 %v589, %v590
          %v592 = vand.u32 %v591, 4294901760
          %593 = vmatpush1.msra.mxu0 %v592
          %594 = vmatprep.subr.mxu0 0.0
          %v595 = vand.u32 %v204, 4294901760
          %v596 = vsub.f32 %v204, %v595
          %v597 = vand.u32 %v596, 4294901760
          %v598 = vsub.f32 %v596, %v597
          %v599 = vand.u32 %v598, 4294901760
          %600 = vmatpush1.msra.mxu0 %v599
          %601 = vmatprep.subr.mxu0 0.0
          %v602 = vand.u32 %v205, 4294901760
          %v603 = vsub.f32 %v205, %v602
          %v604 = vand.u32 %v603, 4294901760
          %v605 = vsub.f32 %v603, %v604
          %v606 = vand.u32 %v605, 4294901760
          %607 = vmatpush1.msra.mxu0 %v606
          %608 = vmatprep.subr.mxu0 0.0
          %v609 = vand.u32 %v206, 4294901760
          %v610 = vsub.f32 %v206, %v609
          %v611 = vand.u32 %v610, 4294901760
          %v612 = vsub.f32 %v610, %v611
          %v613 = vand.u32 %v612, 4294901760
          %614 = vmatpush1.msra.mxu0 %v613
          %615 = vmatprep.subr.mxu0 0.0
          %v616 = vand.u32 %v207, 4294901760
          %v617 = vsub.f32 %v207, %v616
          %v618 = vand.u32 %v617, 4294901760
          %v619 = vsub.f32 %v617, %v618
          %v620 = vand.u32 %v619, 4294901760
          %621 = vmatpush1.msra.mxu0 %v620
          %622 = vmatprep.subr.mxu0 0.0
          %v623 = vand.u32 %v208, 4294901760
          %v624 = vsub.f32 %v208, %v623
          %v625 = vand.u32 %v624, 4294901760
          %v626 = vsub.f32 %v624, %v625
          %v627 = vand.u32 %v626, 4294901760
          %628 = vmatpush1.msra.mxu0 %v627
          %629 = vmatprep.subr.mxu0 0.0
          %v630 = vand.u32 %v209, 4294901760
          %v631 = vsub.f32 %v209, %v630
          %v632 = vand.u32 %v631, 4294901760
          %v633 = vsub.f32 %v631, %v632
          %v634 = vand.u32 %v633, 4294901760
          %635 = vmatpush1.msra.mxu0 %v634
          %636 = vmatprep.subr.mxu0 0.0
          %v637 = vand.u32 %v210, 4294901760
          %v638 = vsub.f32 %v210, %v637
          %v639 = vand.u32 %v638, 4294901760
          %v640 = vsub.f32 %v638, %v639
          %v641 = vand.u32 %v640, 4294901760
          %642 = vmatpush1.msra.mxu0 %v641
          %643 = vmatprep.subr.mxu0 0.0
          %v644 = vand.u32 %v211, 4294901760
          %v645 = vsub.f32 %v211, %v644
          %v646 = vand.u32 %v645, 4294901760
          %v647 = vsub.f32 %v645, %v646
          %v648 = vand.u32 %v647, 4294901760
          %649 = vmatpush1.msra.mxu0 %v648
          %650 = vmatprep.subr.mxu0 0.0
          %v651 = vand.u32 %v212, 4294901760
          %v652 = vsub.f32 %v212, %v651
          %v653 = vand.u32 %v652, 4294901760
          %v654 = vsub.f32 %v652, %v653
          %v655 = vand.u32 %v654, 4294901760
          %656 = vmatpush1.msra.mxu0 %v655
          %657 = vmatprep.subr.mxu0 0.0
          %v658 = vand.u32 %v213, 4294901760
          %v659 = vsub.f32 %v213, %v658
          %v660 = vand.u32 %v659, 4294901760
          %v661 = vsub.f32 %v659, %v660
          %v662 = vand.u32 %v661, 4294901760
          %663 = vmatpush1.msra.mxu0 %v662
          %664 = vmatprep.subr.mxu0 0.0
          %v665 = vand.u32 %v214, 4294901760
          %v666 = vsub.f32 %v214, %v665
          %v667 = vand.u32 %v666, 4294901760
          %v668 = vsub.f32 %v666, %v667
          %v669 = vand.u32 %v668, 4294901760
          %670 = vmatpush1.msra.mxu0 %v669
          %671 = vmatprep.subr.mxu0 0.0
          %v672 = vand.u32 %v215, 4294901760
          %v673 = vsub.f32 %v215, %v672
          %v674 = vand.u32 %v673, 4294901760
          %v675 = vsub.f32 %v673, %v674
          %v676 = vand.u32 %v675, 4294901760
          %677 = vmatpush1.msra.mxu0 %v676
          %678 = vmatprep.subr.mxu0 0.0
          %v679 = vand.u32 %v216, 4294901760
          %v680 = vsub.f32 %v216, %v679
          %v681 = vand.u32 %v680, 4294901760
          %v682 = vsub.f32 %v680, %v681
          %v683 = vand.u32 %v682, 4294901760
          %684 = vmatpush1.msra.mxu0 %v683
          %685 = vmatprep.subr.mxu0 0.0
          %v686 = vand.u32 %v217, 4294901760
          %v687 = vsub.f32 %v217, %v686
          %v688 = vand.u32 %v687, 4294901760
          %v689 = vsub.f32 %v687, %v688
          %v690 = vand.u32 %v689, 4294901760
          %691 = vmatpush1.msra.mxu0 %v690
          %692 = vmatprep.subr.mxu0 0.0
          %v693 = vand.u32 %v218, 4294901760
          %v694 = vsub.f32 %v218, %v693
          %v695 = vand.u32 %v694, 4294901760
          %v696 = vsub.f32 %v694, %v695
          %v697 = vand.u32 %v696, 4294901760
          %698 = vmatpush1.msra.mxu0 %v697
          %699 = vmatprep.subr.mxu0 0.0
          %v700 = vand.u32 %v219, 4294901760
          %v701 = vsub.f32 %v219, %v700
          %v702 = vand.u32 %v701, 4294901760
          %v703 = vsub.f32 %v701, %v702
          %v704 = vand.u32 %v703, 4294901760
          %705 = vmatpush1.msra.mxu0 %v704
          %706 = vmatprep.subr.mxu0 0.0
          %v707 = vand.u32 %v220, 4294901760
          %v708 = vsub.f32 %v220, %v707
          %v709 = vand.u32 %v708, 4294901760
          %v710 = vsub.f32 %v708, %v709
          %v711 = vand.u32 %v710, 4294901760
          %712 = vmatpush1.msra.mxu0 %v711
          %713 = vmatprep.subr.mxu0 0.0
          %v714 = vand.u32 %v221, 4294901760
          %v715 = vsub.f32 %v221, %v714
          %v716 = vand.u32 %v715, 4294901760
          %v717 = vsub.f32 %v715, %v716
          %v718 = vand.u32 %v717, 4294901760
          %719 = vmatpush1.msra.mxu0 %v718
          %720 = vmatprep.subr.mxu0 0.0
          %v721 = vand.u32 %v222, 4294901760
          %v722 = vsub.f32 %v222, %v721
          %v723 = vand.u32 %v722, 4294901760
          %v724 = vsub.f32 %v722, %v723
          %v725 = vand.u32 %v724, 4294901760
          %726 = vmatpush1.msra.mxu0 %v725
          %727 = vmatprep.subr.mxu0 0.0
          %v728 = vand.u32 %v223, 4294901760
          %v729 = vsub.f32 %v223, %v728
          %v730 = vand.u32 %v729, 4294901760
          %v731 = vsub.f32 %v729, %v730
          %v732 = vand.u32 %v731, 4294901760
          %733 = vmatpush1.msra.mxu0 %v732
          %734 = vmatprep.subr.mxu0 0.0
          %v735 = vand.u32 %v224, 4294901760
          %v736 = vsub.f32 %v224, %v735
          %v737 = vand.u32 %v736, 4294901760
          %v738 = vsub.f32 %v736, %v737
          %v739 = vand.u32 %v738, 4294901760
          %740 = vmatpush1.msra.mxu0 %v739
          %741 = vmatprep.subr.mxu0 0.0
          %v742 = vand.u32 %v225, 4294901760
          %v743 = vsub.f32 %v225, %v742
          %v744 = vand.u32 %v743, 4294901760
          %v745 = vsub.f32 %v743, %v744
          %v746 = vand.u32 %v745, 4294901760
          %747 = vmatpush1.msra.mxu0 %v746
          %748 = vmatprep.subr.mxu0 0.0
          %v749 = vand.u32 %v226, 4294901760
          %v750 = vsub.f32 %v226, %v749
          %v751 = vand.u32 %v750, 4294901760
          %v752 = vsub.f32 %v750, %v751
          %v753 = vand.u32 %v752, 4294901760
          %754 = vmatpush1.msra.mxu0 %v753
          %755 = vmatprep.subr.mxu0 0.0
          %v756 = vand.u32 %v227, 4294901760
          %v757 = vsub.f32 %v227, %v756
          %v758 = vand.u32 %v757, 4294901760
          %v759 = vsub.f32 %v757, %v758
          %v760 = vand.u32 %v759, 4294901760
          %761 = vmatpush1.msra.mxu0 %v760
          %762 = vmatprep.subr.mxu0 0.0
          %v763 = vand.u32 %v228, 4294901760
          %v764 = vsub.f32 %v228, %v763
          %v765 = vand.u32 %v764, 4294901760
          %v766 = vsub.f32 %v764, %v765
          %v767 = vand.u32 %v766, 4294901760
          %768 = vmatpush1.msra.mxu0 %v767
          %769 = vmatprep.subr.mxu0 0.0
          %v770 = vand.u32 %v229, 4294901760
          %v771 = vsub.f32 %v229, %v770
          %v772 = vand.u32 %v771, 4294901760
          %v773 = vsub.f32 %v771, %v772
          %v774 = vand.u32 %v773, 4294901760
          %775 = vmatpush1.msra.mxu0 %v774
          %776 = vmatprep.subr.mxu0 0.0
          %v777 = vand.u32 %v230, 4294901760
          %v778 = vsub.f32 %v230, %v777
          %v779 = vand.u32 %v778, 4294901760
          %v780 = vsub.f32 %v778, %v779
          %v781 = vand.u32 %v780, 4294901760
          %782 = vmatpush1.msra.mxu0 %v781
          %783 = vmatprep.subr.mxu0 0.0
          %v784 = vand.u32 %v231, 4294901760
          %v785 = vsub.f32 %v231, %v784
          %v786 = vand.u32 %v785, 4294901760
          %v787 = vsub.f32 %v785, %v786
          %v788 = vand.u32 %v787, 4294901760
          %789 = vmatpush1.msra.mxu0 %v788
          %790 = vmatprep.subr.mxu0 0.0
          %v791 = vand.u32 %v232, 4294901760
          %v792 = vsub.f32 %v232, %v791
          %v793 = vand.u32 %v792, 4294901760
          %v794 = vsub.f32 %v792, %v793
          %v795 = vand.u32 %v794, 4294901760
          %796 = vmatpush1.msra.mxu0 %v795
          %797 = vmatprep.subr.mxu0 0.0
          %v798 = vand.u32 %v233, 4294901760
          %v799 = vsub.f32 %v233, %v798
          %v800 = vand.u32 %v799, 4294901760
          %v801 = vsub.f32 %v799, %v800
          %v802 = vand.u32 %v801, 4294901760
          %803 = vmatpush1.msra.mxu0 %v802
          %804 = vmatprep.subr.mxu0 0.0
          %v805 = vand.u32 %v234, 4294901760
          %v806 = vsub.f32 %v234, %v805
          %v807 = vand.u32 %v806, 4294901760
          %v808 = vsub.f32 %v806, %v807
          %v809 = vand.u32 %v808, 4294901760
          %810 = vmatpush1.msra.mxu0 %v809
          %v811 = vand.u32 %v405, 4294901760
          %812 = vmatprep.mubr.f32.mxu0 %v811
          %v813 = vand.u32 %v404, 4294901760
          %814 = vmatmul.mubr.f32.gmra.mrb[0].mxu0 %v813
          %v815 = vpop.f32.mrb[0].mxu0
          %v816 = vadd.f32 %v539, %v815
          %v817 = vpop.f32.mrb[0].mxu0
          %v818 = vand.u32 %v407, 4294901760
          %819 = vmatprep.mubr.f32.mxu0 %v818
          %v820 = vand.u32 %v406, 4294901760
          %821 = vmatmul.mubr.f32.gmra.mrb[0].mxu0 %v820
          %v822 = vpop.f32.mrb[0].mxu0
          %v823 = vadd.f32 %v554, %v822
          %v824 = vpop.f32.mrb[0].mxu0
          %v825 = vand.u32 %v427, 4294901760
          %826 = vmatprep.mubr.f32.mxu0 %v825
          %v827 = vand.u32 %v426, 4294901760
          %828 = vmatmul.mubr.f32.gmra.mrb[0].mxu0 %v827
          %v829 = vpop.f32.mrb[0].mxu0
          %v830 = vadd.f32 %v569, %v829
          %v831 = vpop.f32.mrb[0].mxu0
          %v832 = vand.u32 %v429, 4294901760
          %833 = vmatprep.mubr.f32.mxu0 %v832
          %v834 = vand.u32 %v428, 4294901760
          %835 = vmatmul.mubr.f32.gmra.mrb[0].mxu0 %v834
          %v836 = vpop.f32.mrb[0].mxu0
          %v837 = vadd.f32 %v584, %v836
          %v838 = vpop.f32.mrb[0].mxu0
          %839 = vdwg.mxu0
          %840 = vmatprep.subr.mxu0 0.0
          %v841 = vand.u32 %v203, 4294901760
          %v842 = vsub.f32 %v203, %v841
          %843 = vmatpush1.msra.mxu0 %v842
          %844 = vmatprep.subr.mxu0 0.0
          %v845 = vand.u32 %v204, 4294901760
          %v846 = vsub.f32 %v204, %v845
          %847 = vmatpush1.msra.mxu0 %v846
          %848 = vmatprep.subr.mxu0 0.0
          %v849 = vand.u32 %v205, 4294901760
          %v850 = vsub.f32 %v205, %v849
          %851 = vmatpush1.msra.mxu0 %v850
          %852 = vmatprep.subr.mxu0 0.0
          %v853 = vand.u32 %v206, 4294901760
          %v854 = vsub.f32 %v206, %v853
          %855 = vmatpush1.msra.mxu0 %v854
          %856 = vmatprep.subr.mxu0 0.0
          %v857 = vand.u32 %v207, 4294901760
          %v858 = vsub.f32 %v207, %v857
          %859 = vmatpush1.msra.mxu0 %v858
          %860 = vmatprep.subr.mxu0 0.0
          %v861 = vand.u32 %v208, 4294901760
          %v862 = vsub.f32 %v208, %v861
          %863 = vmatpush1.msra.mxu0 %v862
          %864 = vmatprep.subr.mxu0 0.0
          %v865 = vand.u32 %v209, 4294901760
          %v866 = vsub.f32 %v209, %v865
          %867 = vmatpush1.msra.mxu0 %v866
          %868 = vmatprep.subr.mxu0 0.0
          %v869 = vand.u32 %v210, 4294901760
          %v870 = vsub.f32 %v210, %v869
          %871 = vmatpush1.msra.mxu0 %v870
          %872 = vmatprep.subr.mxu0 0.0
          %v873 = vand.u32 %v211, 4294901760
          %v874 = vsub.f32 %v211, %v873
          %875 = vmatpush1.msra.mxu0 %v874
          %876 = vmatprep.subr.mxu0 0.0
          %v877 = vand.u32 %v212, 4294901760
          %v878 = vsub.f32 %v212, %v877
          %879 = vmatpush1.msra.mxu0 %v878
          %880 = vmatprep.subr.mxu0 0.0
          %v881 = vand.u32 %v213, 4294901760
          %v882 = vsub.f32 %v213, %v881
          %883 = vmatpush1.msra.mxu0 %v882
          %884 = vmatprep.subr.mxu0 0.0
          %v885 = vand.u32 %v214, 4294901760
          %v886 = vsub.f32 %v214, %v885
          %887 = vmatpush1.msra.mxu0 %v886
          %888 = vmatprep.subr.mxu0 0.0
          %v889 = vand.u32 %v215, 4294901760
          %v890 = vsub.f32 %v215, %v889
          %891 = vmatpush1.msra.mxu0 %v890
          %892 = vmatprep.subr.mxu0 0.0
          %v893 = vand.u32 %v216, 4294901760
          %v894 = vsub.f32 %v216, %v893
          %895 = vmatpush1.msra.mxu0 %v894
          %896 = vmatprep.subr.mxu0 0.0
          %v897 = vand.u32 %v217, 4294901760
          %v898 = vsub.f32 %v217, %v897
          %899 = vmatpush1.msra.mxu0 %v898
          %900 = vmatprep.subr.mxu0 0.0
          %v901 = vand.u32 %v218, 4294901760
          %v902 = vsub.f32 %v218, %v901
          %903 = vmatpush1.msra.mxu0 %v902
          %904 = vmatprep.subr.mxu0 0.0
          %v905 = vand.u32 %v219, 4294901760
          %v906 = vsub.f32 %v219, %v905
          %907 = vmatpush1.msra.mxu0 %v906
          %908 = vmatprep.subr.mxu0 0.0
          %v909 = vand.u32 %v220, 4294901760
          %v910 = vsub.f32 %v220, %v909
          %911 = vmatpush1.msra.mxu0 %v910
          %912 = vmatprep.subr.mxu0 0.0
          %v913 = vand.u32 %v221, 4294901760
          %v914 = vsub.f32 %v221, %v913
          %915 = vmatpush1.msra.mxu0 %v914
          %916 = vmatprep.subr.mxu0 0.0
          %v917 = vand.u32 %v222, 4294901760
          %v918 = vsub.f32 %v222, %v917
          %919 = vmatpush1.msra.mxu0 %v918
          %920 = vmatprep.subr.mxu0 0.0
          %v921 = vand.u32 %v223, 4294901760
          %v922 = vsub.f32 %v223, %v921
          %923 = vmatpush1.msra.mxu0 %v922
          %924 = vmatprep.subr.mxu0 0.0
          %v925 = vand.u32 %v224, 4294901760
          %v926 = vsub.f32 %v224, %v925
          %927 = vmatpush1.msra.mxu0 %v926
          %928 = vmatprep.subr.mxu0 0.0
          %v929 = vand.u32 %v225, 4294901760
          %v930 = vsub.f32 %v225, %v929
          %931 = vmatpush1.msra.mxu0 %v930
          %932 = vmatprep.subr.mxu0 0.0
          %v933 = vand.u32 %v226, 4294901760
          %v934 = vsub.f32 %v226, %v933
          %935 = vmatpush1.msra.mxu0 %v934
          %936 = vmatprep.subr.mxu0 0.0
          %v937 = vand.u32 %v227, 4294901760
          %v938 = vsub.f32 %v227, %v937
          %939 = vmatpush1.msra.mxu0 %v938
          %940 = vmatprep.subr.mxu0 0.0
          %v941 = vand.u32 %v228, 4294901760
          %v942 = vsub.f32 %v228, %v941
          %943 = vmatpush1.msra.mxu0 %v942
          %944 = vmatprep.subr.mxu0 0.0
          %v945 = vand.u32 %v229, 4294901760
          %v946 = vsub.f32 %v229, %v945
          %947 = vmatpush1.msra.mxu0 %v946
          %948 = vmatprep.subr.mxu0 0.0
          %v949 = vand.u32 %v230, 4294901760
          %v950 = vsub.f32 %v230, %v949
          %951 = vmatpush1.msra.mxu0 %v950
          %952 = vmatprep.subr.mxu0 0.0
          %v953 = vand.u32 %v231, 4294901760
          %v954 = vsub.f32 %v231, %v953
          %955 = vmatpush1.msra.mxu0 %v954
          %956 = vmatprep.subr.mxu0 0.0
          %v957 = vand.u32 %v232, 4294901760
          %v958 = vsub.f32 %v232, %v957
          %959 = vmatpush1.msra.mxu0 %v958
          %960 = vmatprep.subr.mxu0 0.0
          %v961 = vand.u32 %v233, 4294901760
          %v962 = vsub.f32 %v233, %v961
          %963 = vmatpush1.msra.mxu0 %v962
          %964 = vmatprep.subr.mxu0 0.0
          %v965 = vand.u32 %v234, 4294901760
          %v966 = vsub.f32 %v234, %v965
          %967 = vmatpush1.msra.mxu0 %v966
          %v968 = vand.u32 %v405, 4294901760
          %v969 = vsub.f32 %v405, %v968
          %970 = vmatprep.mubr.f32.mxu0 %v969
          %v971 = vand.u32 %v404, 4294901760
          %v972 = vsub.f32 %v404, %v971
          %973 = vmatmul.mubr.f32.gmra.mrb[0].mxu0 %v972
          %v974 = vpop.f32.mrb[0].mxu0
          %v975 = vadd.f32 %v816, %v974
          %v976 = vpop.f32.mrb[0].mxu0
          %v977 = vand.u32 %v407, 4294901760
          %v978 = vsub.f32 %v407, %v977
          %979 = vmatprep.mubr.f32.mxu0 %v978
          %v980 = vand.u32 %v406, 4294901760
          %v981 = vsub.f32 %v406, %v980
          %982 = vmatmul.mubr.f32.gmra.mrb[0].mxu0 %v981
          %v983 = vpop.f32.mrb[0].mxu0
          %v984 = vadd.f32 %v823, %v983
          %v985 = vpop.f32.mrb[0].mxu0
          %v986 = vand.u32 %v427, 4294901760
          %v987 = vsub.f32 %v427, %v986
          %988 = vmatprep.mubr.f32.mxu0 %v987
          %v989 = vand.u32 %v426, 4294901760
          %v990 = vsub.f32 %v426, %v989
          %991 = vmatmul.mubr.f32.gmra.mrb[0].mxu0 %v990
          %v992 = vpop.f32.mrb[0].mxu0
          %v993 = vadd.f32 %v830, %v992
          %v994 = vpop.f32.mrb[0].mxu0
          %v995 = vand.u32 %v429, 4294901760
          %v996 = vsub.f32 %v429, %v995
          %997 = vmatprep.mubr.f32.mxu0 %v996
          %v998 = vand.u32 %v428, 4294901760
          %v999 = vsub.f32 %v428, %v998
          %1000 = vmatmul.mubr.f32.gmra.mrb[0].mxu0 %v999
          %v1001 = vpop.f32.mrb[0].mxu0
          %v1002 = vadd.f32 %v837, %v1001
          %v1003 = vpop.f32.mrb[0].mxu0
          %1004 = vdwg.mxu0
          %1005 = vmatprep.subr.mxu0 0.0
          %v1006 = vand.u32 %v203, 4294901760
          %1007 = vmatpush1.msra.mxu0 %v1006
          %1008 = vmatprep.subr.mxu0 0.0
          %v1009 = vand.u32 %v204, 4294901760
          %1010 = vmatpush1.msra.mxu0 %v1009
          %1011 = vmatprep.subr.mxu0 0.0
          %v1012 = vand.u32 %v205, 4294901760
          %1013 = vmatpush1.msra.mxu0 %v1012
          %1014 = vmatprep.subr.mxu0 0.0
          %v1015 = vand.u32 %v206, 4294901760
          %1016 = vmatpush1.msra.mxu0 %v1015
          %1017 = vmatprep.subr.mxu0 0.0
          %v1018 = vand.u32 %v207, 4294901760
          %1019 = vmatpush1.msra.mxu0 %v1018
          %1020 = vmatprep.subr.mxu0 0.0
          %v1021 = vand.u32 %v208, 4294901760
          %1022 = vmatpush1.msra.mxu0 %v1021
          %1023 = vmatprep.subr.mxu0 0.0
          %v1024 = vand.u32 %v209, 4294901760
          %1025 = vmatpush1.msra.mxu0 %v1024
          %1026 = vmatprep.subr.mxu0 0.0
          %v1027 = vand.u32 %v210, 4294901760
          %1028 = vmatpush1.msra.mxu0 %v1027
          %1029 = vmatprep.subr.mxu0 0.0
          %v1030 = vand.u32 %v211, 4294901760
          %1031 = vmatpush1.msra.mxu0 %v1030
          %1032 = vmatprep.subr.mxu0 0.0
          %v1033 = vand.u32 %v212, 4294901760
          %1034 = vmatpush1.msra.mxu0 %v1033
          %1035 = vmatprep.subr.mxu0 0.0
          %v1036 = vand.u32 %v213, 4294901760
          %1037 = vmatpush1.msra.mxu0 %v1036
          %1038 = vmatprep.subr.mxu0 0.0
          %v1039 = vand.u32 %v214, 4294901760
          %1040 = vmatpush1.msra.mxu0 %v1039
          %1041 = vmatprep.subr.mxu0 0.0
          %v1042 = vand.u32 %v215, 4294901760
          %1043 = vmatpush1.msra.mxu0 %v1042
          %1044 = vmatprep.subr.mxu0 0.0
          %v1045 = vand.u32 %v216, 4294901760
          %1046 = vmatpush1.msra.mxu0 %v1045
          %1047 = vmatprep.subr.mxu0 0.0
          %v1048 = vand.u32 %v217, 4294901760
          %1049 = vmatpush1.msra.mxu0 %v1048
          %1050 = vmatprep.subr.mxu0 0.0
          %v1051 = vand.u32 %v218, 4294901760
          %1052 = vmatpush1.msra.mxu0 %v1051
          %1053 = vmatprep.subr.mxu0 0.0
          %v1054 = vand.u32 %v219, 4294901760
          %1055 = vmatpush1.msra.mxu0 %v1054
          %1056 = vmatprep.subr.mxu0 0.0
          %v1057 = vand.u32 %v220, 4294901760
          %1058 = vmatpush1.msra.mxu0 %v1057
          %1059 = vmatprep.subr.mxu0 0.0
          %v1060 = vand.u32 %v221, 4294901760
          %1061 = vmatpush1.msra.mxu0 %v1060
          %1062 = vmatprep.subr.mxu0 0.0
          %v1063 = vand.u32 %v222, 4294901760
          %1064 = vmatpush1.msra.mxu0 %v1063
          %1065 = vmatprep.subr.mxu0 0.0
          %v1066 = vand.u32 %v223, 4294901760
          %1067 = vmatpush1.msra.mxu0 %v1066
          %1068 = vmatprep.subr.mxu0 0.0
          %v1069 = vand.u32 %v224, 4294901760
          %1070 = vmatpush1.msra.mxu0 %v1069
          %1071 = vmatprep.subr.mxu0 0.0
          %v1072 = vand.u32 %v225, 4294901760
          %1073 = vmatpush1.msra.mxu0 %v1072
          %1074 = vmatprep.subr.mxu0 0.0
          %v1075 = vand.u32 %v226, 4294901760
          %1076 = vmatpush1.msra.mxu0 %v1075
          %1077 = vmatprep.subr.mxu0 0.0
          %v1078 = vand.u32 %v227, 4294901760
          %1079 = vmatpush1.msra.mxu0 %v1078
          %1080 = vmatprep.subr.mxu0 0.0
          %v1081 = vand.u32 %v228, 4294901760
          %1082 = vmatpush1.msra.mxu0 %v1081
          %1083 = vmatprep.subr.mxu0 0.0
          %v1084 = vand.u32 %v229, 4294901760
          %1085 = vmatpush1.msra.mxu0 %v1084
          %1086 = vmatprep.subr.mxu0 0.0
          %v1087 = vand.u32 %v230, 4294901760
          %1088 = vmatpush1.msra.mxu0 %v1087
          %1089 = vmatprep.subr.mxu0 0.0
          %v1090 = vand.u32 %v231, 4294901760
          %1091 = vmatpush1.msra.mxu0 %v1090
          %1092 = vmatprep.subr.mxu0 0.0
          %v1093 = vand.u32 %v232, 4294901760
          %1094 = vmatpush1.msra.mxu0 %v1093
          %1095 = vmatprep.subr.mxu0 0.0
          %v1096 = vand.u32 %v233, 4294901760
          %1097 = vmatpush1.msra.mxu0 %v1096
          %1098 = vmatprep.subr.mxu0 0.0
          %v1099 = vand.u32 %v234, 4294901760
          %1100 = vmatpush1.msra.mxu0 %v1099
          %v1101 = vand.u32 %v405, 4294901760
          %v1102 = vsub.f32 %v405, %v1101
          %v1103 = vand.u32 %v1102, 4294901760
          %1104 = vmatprep.mubr.f32.mxu0 %v1103
          %v1105 = vand.u32 %v404, 4294901760
          %v1106 = vsub.f32 %v404, %v1105
          %v1107 = vand.u32 %v1106, 4294901760
          %1108 = vmatmul.mubr.f32.gmra.mrb[0].mxu0 %v1107
          %v1109 = vpop.f32.mrb[0].mxu0
          %v1110 = vadd.f32 %v975, %v1109
          %v1111 = vpop.f32.mrb[0].mxu0
          %v1112 = vand.u32 %v407, 4294901760
          %v1113 = vsub.f32 %v407, %v1112
          %v1114 = vand.u32 %v1113, 4294901760
          %1115 = vmatprep.mubr.f32.mxu0 %v1114
          %v1116 = vand.u32 %v406, 4294901760
          %v1117 = vsub.f32 %v406, %v1116
          %v1118 = vand.u32 %v1117, 4294901760
          %1119 = vmatmul.mubr.f32.gmra.mrb[0].mxu0 %v1118
          %v1120 = vpop.f32.mrb[0].mxu0
          %v1121 = vadd.f32 %v984, %v1120
          %v1122 = vpop.f32.mrb[0].mxu0
          %v1123 = vand.u32 %v427, 4294901760
          %v1124 = vsub.f32 %v427, %v1123
          %v1125 = vand.u32 %v1124, 4294901760
          %1126 = vmatprep.mubr.f32.mxu0 %v1125
          %v1127 = vand.u32 %v426, 4294901760
          %v1128 = vsub.f32 %v426, %v1127
          %v1129 = vand.u32 %v1128, 4294901760
          %1130 = vmatmul.mubr.f32.gmra.mrb[0].mxu0 %v1129
          %v1131 = vpop.f32.mrb[0].mxu0
          %v1132 = vadd.f32 %v993, %v1131
          %v1133 = vpop.f32.mrb[0].mxu0
          %v1134 = vand.u32 %v429, 4294901760
          %v1135 = vsub.f32 %v429, %v1134
          %v1136 = vand.u32 %v1135, 4294901760
          %1137 = vmatprep.mubr.f32.mxu0 %v1136
          %v1138 = vand.u32 %v428, 4294901760
          %v1139 = vsub.f32 %v428, %v1138
          %v1140 = vand.u32 %v1139, 4294901760
          %1141 = vmatmul.mubr.f32.gmra.mrb[0].mxu0 %v1140
          %v1142 = vpop.f32.mrb[0].mxu0
          %v1143 = vadd.f32 %v1002, %v1142
          %v1144 = vpop.f32.mrb[0].mxu0
          %1145 = vdwg.mxu0
          %1146 = vmatprep.subr.mxu0 0.0
          %v1147 = vand.u32 %v203, 4294901760
          %v1148 = vsub.f32 %v203, %v1147
          %v1149 = vand.u32 %v1148, 4294901760
          %1150 = vmatpush1.msra.mxu0 %v1149
          %1151 = vmatprep.subr.mxu0 0.0
          %v1152 = vand.u32 %v204, 4294901760
          %v1153 = vsub.f32 %v204, %v1152
          %v1154 = vand.u32 %v1153, 4294901760
          %1155 = vmatpush1.msra.mxu0 %v1154
          %1156 = vmatprep.subr.mxu0 0.0
          %v1157 = vand.u32 %v205, 4294901760
          %v1158 = vsub.f32 %v205, %v1157
          %v1159 = vand.u32 %v1158, 4294901760
          %1160 = vmatpush1.msra.mxu0 %v1159
          %1161 = vmatprep.subr.mxu0 0.0
          %v1162 = vand.u32 %v206, 4294901760
          %v1163 = vsub.f32 %v206, %v1162
          %v1164 = vand.u32 %v1163, 4294901760
          %1165 = vmatpush1.msra.mxu0 %v1164
          %1166 = vmatprep.subr.mxu0 0.0
          %v1167 = vand.u32 %v207, 4294901760
          %v1168 = vsub.f32 %v207, %v1167
          %v1169 = vand.u32 %v1168, 4294901760
          %1170 = vmatpush1.msra.mxu0 %v1169
          %1171 = vmatprep.subr.mxu0 0.0
          %v1172 = vand.u32 %v208, 4294901760
          %v1173 = vsub.f32 %v208, %v1172
          %v1174 = vand.u32 %v1173, 4294901760
          %1175 = vmatpush1.msra.mxu0 %v1174
          %1176 = vmatprep.subr.mxu0 0.0
          %v1177 = vand.u32 %v209, 4294901760
          %v1178 = vsub.f32 %v209, %v1177
          %v1179 = vand.u32 %v1178, 4294901760
          %1180 = vmatpush1.msra.mxu0 %v1179
          %1181 = vmatprep.subr.mxu0 0.0
          %v1182 = vand.u32 %v210, 4294901760
          %v1183 = vsub.f32 %v210, %v1182
          %v1184 = vand.u32 %v1183, 4294901760
          %1185 = vmatpush1.msra.mxu0 %v1184
          %1186 = vmatprep.subr.mxu0 0.0
          %v1187 = vand.u32 %v211, 4294901760
          %v1188 = vsub.f32 %v211, %v1187
          %v1189 = vand.u32 %v1188, 4294901760
          %1190 = vmatpush1.msra.mxu0 %v1189
          %1191 = vmatprep.subr.mxu0 0.0
          %v1192 = vand.u32 %v212, 4294901760
          %v1193 = vsub.f32 %v212, %v1192
          %v1194 = vand.u32 %v1193, 4294901760
          %1195 = vmatpush1.msra.mxu0 %v1194
          %1196 = vmatprep.subr.mxu0 0.0
          %v1197 = vand.u32 %v213, 4294901760
          %v1198 = vsub.f32 %v213, %v1197
          %v1199 = vand.u32 %v1198, 4294901760
          %1200 = vmatpush1.msra.mxu0 %v1199
          %1201 = vmatprep.subr.mxu0 0.0
          %v1202 = vand.u32 %v214, 4294901760
          %v1203 = vsub.f32 %v214, %v1202
          %v1204 = vand.u32 %v1203, 4294901760
          %1205 = vmatpush1.msra.mxu0 %v1204
          %1206 = vmatprep.subr.mxu0 0.0
          %v1207 = vand.u32 %v215, 4294901760
          %v1208 = vsub.f32 %v215, %v1207
          %v1209 = vand.u32 %v1208, 4294901760
          %1210 = vmatpush1.msra.mxu0 %v1209
          %1211 = vmatprep.subr.mxu0 0.0
          %v1212 = vand.u32 %v216, 4294901760
          %v1213 = vsub.f32 %v216, %v1212
          %v1214 = vand.u32 %v1213, 4294901760
          %1215 = vmatpush1.msra.mxu0 %v1214
          %1216 = vmatprep.subr.mxu0 0.0
          %v1217 = vand.u32 %v217, 4294901760
          %v1218 = vsub.f32 %v217, %v1217
          %v1219 = vand.u32 %v1218, 4294901760
          %1220 = vmatpush1.msra.mxu0 %v1219
          %1221 = vmatprep.subr.mxu0 0.0
          %v1222 = vand.u32 %v218, 4294901760
          %v1223 = vsub.f32 %v218, %v1222
          %v1224 = vand.u32 %v1223, 4294901760
          %1225 = vmatpush1.msra.mxu0 %v1224
          %1226 = vmatprep.subr.mxu0 0.0
          %v1227 = vand.u32 %v219, 4294901760
          %v1228 = vsub.f32 %v219, %v1227
          %v1229 = vand.u32 %v1228, 4294901760
          %1230 = vmatpush1.msra.mxu0 %v1229
          %1231 = vmatprep.subr.mxu0 0.0
          %v1232 = vand.u32 %v220, 4294901760
          %v1233 = vsub.f32 %v220, %v1232
          %v1234 = vand.u32 %v1233, 4294901760
          %1235 = vmatpush1.msra.mxu0 %v1234
          %1236 = vmatprep.subr.mxu0 0.0
          %v1237 = vand.u32 %v221, 4294901760
          %v1238 = vsub.f32 %v221, %v1237
          %v1239 = vand.u32 %v1238, 4294901760
          %1240 = vmatpush1.msra.mxu0 %v1239
          %1241 = vmatprep.subr.mxu0 0.0
          %v1242 = vand.u32 %v222, 4294901760
          %v1243 = vsub.f32 %v222, %v1242
          %v1244 = vand.u32 %v1243, 4294901760
          %1245 = vmatpush1.msra.mxu0 %v1244
          %1246 = vmatprep.subr.mxu0 0.0
          %v1247 = vand.u32 %v223, 4294901760
          %v1248 = vsub.f32 %v223, %v1247
          %v1249 = vand.u32 %v1248, 4294901760
          %1250 = vmatpush1.msra.mxu0 %v1249
          %1251 = vmatprep.subr.mxu0 0.0
          %v1252 = vand.u32 %v224, 4294901760
          %v1253 = vsub.f32 %v224, %v1252
          %v1254 = vand.u32 %v1253, 4294901760
          %1255 = vmatpush1.msra.mxu0 %v1254
          %1256 = vmatprep.subr.mxu0 0.0
          %v1257 = vand.u32 %v225, 4294901760
          %v1258 = vsub.f32 %v225, %v1257
          %v1259 = vand.u32 %v1258, 4294901760
          %1260 = vmatpush1.msra.mxu0 %v1259
          %1261 = vmatprep.subr.mxu0 0.0
          %v1262 = vand.u32 %v226, 4294901760
          %v1263 = vsub.f32 %v226, %v1262
          %v1264 = vand.u32 %v1263, 4294901760
          %1265 = vmatpush1.msra.mxu0 %v1264
          %1266 = vmatprep.subr.mxu0 0.0
          %v1267 = vand.u32 %v227, 4294901760
          %v1268 = vsub.f32 %v227, %v1267
          %v1269 = vand.u32 %v1268, 4294901760
          %1270 = vmatpush1.msra.mxu0 %v1269
          %1271 = vmatprep.subr.mxu0 0.0
          %v1272 = vand.u32 %v228, 4294901760
          %v1273 = vsub.f32 %v228, %v1272
          %v1274 = vand.u32 %v1273, 4294901760
          %1275 = vmatpush1.msra.mxu0 %v1274
          %1276 = vmatprep.subr.mxu0 0.0
          %v1277 = vand.u32 %v229, 4294901760
          %v1278 = vsub.f32 %v229, %v1277
          %v1279 = vand.u32 %v1278, 4294901760
          %1280 = vmatpush1.msra.mxu0 %v1279
          %1281 = vmatprep.subr.mxu0 0.0
          %v1282 = vand.u32 %v230, 4294901760
          %v1283 = vsub.f32 %v230, %v1282
          %v1284 = vand.u32 %v1283, 4294901760
          %1285 = vmatpush1.msra.mxu0 %v1284
          %1286 = vmatprep.subr.mxu0 0.0
          %v1287 = vand.u32 %v231, 4294901760
          %v1288 = vsub.f32 %v231, %v1287
          %v1289 = vand.u32 %v1288, 4294901760
          %1290 = vmatpush1.msra.mxu0 %v1289
          %1291 = vmatprep.subr.mxu0 0.0
          %v1292 = vand.u32 %v232, 4294901760
          %v1293 = vsub.f32 %v232, %v1292
          %v1294 = vand.u32 %v1293, 4294901760
          %1295 = vmatpush1.msra.mxu0 %v1294
          %1296 = vmatprep.subr.mxu0 0.0
          %v1297 = vand.u32 %v233, 4294901760
          %v1298 = vsub.f32 %v233, %v1297
          %v1299 = vand.u32 %v1298, 4294901760
          %1300 = vmatpush1.msra.mxu0 %v1299
          %1301 = vmatprep.subr.mxu0 0.0
          %v1302 = vand.u32 %v234, 4294901760
          %v1303 = vsub.f32 %v234, %v1302
          %v1304 = vand.u32 %v1303, 4294901760
          %1305 = vmatpush1.msra.mxu0 %v1304
          %v1306 = vand.u32 %v405, 4294901760
          %1307 = vmatprep.mubr.f32.mxu0 %v1306
          %v1308 = vand.u32 %v404, 4294901760
          %1309 = vmatmul.mubr.f32.gmra.mrb[0].mxu0 %v1308
          %v1310 = vpop.f32.mrb[0].mxu0
          %v1311 = vadd.f32 %v1110, %v1310
          %v1312 = vpop.f32.mrb[0].mxu0
          %v1313 = vand.u32 %v407, 4294901760
          %1314 = vmatprep.mubr.f32.mxu0 %v1313
          %v1315 = vand.u32 %v406, 4294901760
          %1316 = vmatmul.mubr.f32.gmra.mrb[0].mxu0 %v1315
          %v1317 = vpop.f32.mrb[0].mxu0
          %v1318 = vadd.f32 %v1121, %v1317
          %v1319 = vpop.f32.mrb[0].mxu0
          %v1320 = vand.u32 %v427, 4294901760
          %1321 = vmatprep.mubr.f32.mxu0 %v1320
          %v1322 = vand.u32 %v426, 4294901760
          %1323 = vmatmul.mubr.f32.gmra.mrb[0].mxu0 %v1322
          %v1324 = vpop.f32.mrb[0].mxu0
          %v1325 = vadd.f32 %v1132, %v1324
          %v1326 = vpop.f32.mrb[0].mxu0
          %v1327 = vand.u32 %v429, 4294901760
          %1328 = vmatprep.mubr.f32.mxu0 %v1327
          %v1329 = vand.u32 %v428, 4294901760
          %1330 = vmatmul.mubr.f32.gmra.mrb[0].mxu0 %v1329
          %v1331 = vpop.f32.mrb[0].mxu0
          %v1332 = vadd.f32 %v1143, %v1331
          %v1333 = vpop.f32.mrb[0].mxu0
          %1334 = vdwg.mxu0
          %1335 = vmatprep.subr.mxu0 0.0
          %v1336 = vand.u32 %v203, 4294901760
          %1337 = vmatpush1.msra.mxu0 %v1336
          %1338 = vmatprep.subr.mxu0 0.0
          %v1339 = vand.u32 %v204, 4294901760
          %1340 = vmatpush1.msra.mxu0 %v1339
          %1341 = vmatprep.subr.mxu0 0.0
          %v1342 = vand.u32 %v205, 4294901760
          %1343 = vmatpush1.msra.mxu0 %v1342
          %1344 = vmatprep.subr.mxu0 0.0
          %v1345 = vand.u32 %v206, 4294901760
          %1346 = vmatpush1.msra.mxu0 %v1345
          %1347 = vmatprep.subr.mxu0 0.0
          %v1348 = vand.u32 %v207, 4294901760
          %1349 = vmatpush1.msra.mxu0 %v1348
          %1350 = vmatprep.subr.mxu0 0.0
          %v1351 = vand.u32 %v208, 4294901760
          %1352 = vmatpush1.msra.mxu0 %v1351
          %1353 = vmatprep.subr.mxu0 0.0
          %v1354 = vand.u32 %v209, 4294901760
          %1355 = vmatpush1.msra.mxu0 %v1354
          %1356 = vmatprep.subr.mxu0 0.0
          %v1357 = vand.u32 %v210, 4294901760
          %1358 = vmatpush1.msra.mxu0 %v1357
          %1359 = vmatprep.subr.mxu0 0.0
          %v1360 = vand.u32 %v211, 4294901760
          %1361 = vmatpush1.msra.mxu0 %v1360
          %1362 = vmatprep.subr.mxu0 0.0
          %v1363 = vand.u32 %v212, 4294901760
          %1364 = vmatpush1.msra.mxu0 %v1363
          %1365 = vmatprep.subr.mxu0 0.0
          %v1366 = vand.u32 %v213, 4294901760
          %1367 = vmatpush1.msra.mxu0 %v1366
          %1368 = vmatprep.subr.mxu0 0.0
          %v1369 = vand.u32 %v214, 4294901760
          %1370 = vmatpush1.msra.mxu0 %v1369
          %1371 = vmatprep.subr.mxu0 0.0
          %v1372 = vand.u32 %v215, 4294901760
          %1373 = vmatpush1.msra.mxu0 %v1372
          %1374 = vmatprep.subr.mxu0 0.0
          %v1375 = vand.u32 %v216, 4294901760
          %1376 = vmatpush1.msra.mxu0 %v1375
          %1377 = vmatprep.subr.mxu0 0.0
          %v1378 = vand.u32 %v217, 4294901760
          %1379 = vmatpush1.msra.mxu0 %v1378
          %1380 = vmatprep.subr.mxu0 0.0
          %v1381 = vand.u32 %v218, 4294901760
          %1382 = vmatpush1.msra.mxu0 %v1381
          %1383 = vmatprep.subr.mxu0 0.0
          %v1384 = vand.u32 %v219, 4294901760
          %1385 = vmatpush1.msra.mxu0 %v1384
          %1386 = vmatprep.subr.mxu0 0.0
          %v1387 = vand.u32 %v220, 4294901760
          %1388 = vmatpush1.msra.mxu0 %v1387
          %1389 = vmatprep.subr.mxu0 0.0
          %v1390 = vand.u32 %v221, 4294901760
          %1391 = vmatpush1.msra.mxu0 %v1390
          %1392 = vmatprep.subr.mxu0 0.0
          %v1393 = vand.u32 %v222, 4294901760
          %1394 = vmatpush1.msra.mxu0 %v1393
          %1395 = vmatprep.subr.mxu0 0.0
          %v1396 = vand.u32 %v223, 4294901760
          %1397 = vmatpush1.msra.mxu0 %v1396
          %1398 = vmatprep.subr.mxu0 0.0
          %v1399 = vand.u32 %v224, 4294901760
          %1400 = vmatpush1.msra.mxu0 %v1399
          %1401 = vmatprep.subr.mxu0 0.0
          %v1402 = vand.u32 %v225, 4294901760
          %1403 = vmatpush1.msra.mxu0 %v1402
          %1404 = vmatprep.subr.mxu0 0.0
          %v1405 = vand.u32 %v226, 4294901760
          %1406 = vmatpush1.msra.mxu0 %v1405
          %1407 = vmatprep.subr.mxu0 0.0
          %v1408 = vand.u32 %v227, 4294901760
          %1409 = vmatpush1.msra.mxu0 %v1408
          %1410 = vmatprep.subr.mxu0 0.0
          %v1411 = vand.u32 %v228, 4294901760
          %1412 = vmatpush1.msra.mxu0 %v1411
          %1413 = vmatprep.subr.mxu0 0.0
          %v1414 = vand.u32 %v229, 4294901760
          %1415 = vmatpush1.msra.mxu0 %v1414
          %1416 = vmatprep.subr.mxu0 0.0
          %v1417 = vand.u32 %v230, 4294901760
          %1418 = vmatpush1.msra.mxu0 %v1417
          %1419 = vmatprep.subr.mxu0 0.0
          %v1420 = vand.u32 %v231, 4294901760
          %1421 = vmatpush1.msra.mxu0 %v1420
          %1422 = vmatprep.subr.mxu0 0.0
          %v1423 = vand.u32 %v232, 4294901760
          %1424 = vmatpush1.msra.mxu0 %v1423
          %1425 = vmatprep.subr.mxu0 0.0
          %v1426 = vand.u32 %v233, 4294901760
          %1427 = vmatpush1.msra.mxu0 %v1426
          %1428 = vmatprep.subr.mxu0 0.0
          %v1429 = vand.u32 %v234, 4294901760
          %1430 = vmatpush1.msra.mxu0 %v1429
          %v1431 = vand.u32 %v405, 4294901760
          %1432 = vmatprep.mubr.f32.mxu0 %v1431
          %v1433 = vand.u32 %v404, 4294901760
          %1434 = vmatmul.mubr.f32.gmra.mrb[0].mxu0 %v1433
          %v1435 = vpop.f32.mrb[0].mxu0
          %v1436 = vadd.f32 %v1311, %v1435
          %v1437 = vpop.f32.mrb[0].mxu0
          %v1438 = vand.u32 %v407, 4294901760
          %1439 = vmatprep.mubr.f32.mxu0 %v1438
          %v1440 = vand.u32 %v406, 4294901760
          %1441 = vmatmul.mubr.f32.gmra.mrb[0].mxu0 %v1440
          %v1442 = vpop.f32.mrb[0].mxu0
          %v1443 = vadd.f32 %v1318, %v1442
          %v1444 = vpop.f32.mrb[0].mxu0
          %v1445 = vand.u32 %v427, 4294901760
          %1446 = vmatprep.mubr.f32.mxu0 %v1445
          %v1447 = vand.u32 %v426, 4294901760
          %1448 = vmatmul.mubr.f32.gmra.mrb[0].mxu0 %v1447
          %v1449 = vpop.f32.mrb[0].mxu0
          %v1450 = vadd.f32 %v1325, %v1449
          %v1451 = vpop.f32.mrb[0].mxu0
          %v1452 = vand.u32 %v429, 4294901760
          %1453 = vmatprep.mubr.f32.mxu0 %v1452
          %v1454 = vand.u32 %v428, 4294901760
          %1455 = vmatmul.mubr.f32.gmra.mrb[0].mxu0 %v1454
          %v1456 = vpop.f32.mrb[0].mxu0
          %v1457 = vadd.f32 %v1332, %v1456
          %v1458 = vpop.f32.mrb[0].mxu0
          %1459 = vdwg.mxu0
          %vm1460 = vcmask 130048
          %v1462 = vsel %vm1460, %v1436, 0
          %v1465 = vsel %vm1460, %v1443, 0
          %v1468 = vsel %vm1460, %v1450, 0
          %v1471 = vsel %vm1460, %v1457, 0
          %v1473 = vand.u32 %v324, 4294901760
          %1474 = vmatprep.subr.mxu0 %v1473
          %v1475 = vand.u32 %v323, 4294901760
          %1476 = vmatpush1.msra.mxu0 %v1475
          %v1477 = vand.u32 %v326, 4294901760
          %1478 = vmatprep.subr.mxu0 %v1477
          %v1479 = vand.u32 %v325, 4294901760
          %1480 = vmatpush1.msra.mxu0 %v1479
          %1481 = vmatprep.subr.mxu0 0.0
          %1482 = vmatpush1.msra.mxu0 0.0
          %1483 = vmatprep.subr.mxu0 0.0
          %1484 = vmatpush1.msra.mxu0 0.0
          %1485 = vmatprep.subr.mxu0 0.0
          %1486 = vmatpush1.msra.mxu0 0.0
          %1487 = vmatprep.subr.mxu0 0.0
          %1488 = vmatpush1.msra.mxu0 0.0
          %1489 = vmatprep.subr.mxu0 0.0
          %1490 = vmatpush1.msra.mxu0 0.0
          %1491 = vmatprep.subr.mxu0 0.0
          %1492 = vmatpush1.msra.mxu0 0.0
          %1493 = vmatprep.subr.mxu0 0.0
          %1494 = vmatpush1.msra.mxu0 0.0
          %1495 = vmatprep.subr.mxu0 0.0
          %1496 = vmatpush1.msra.mxu0 0.0
          %1497 = vmatprep.subr.mxu0 0.0
          %1498 = vmatpush1.msra.mxu0 0.0
          %1499 = vmatprep.subr.mxu0 0.0
          %1500 = vmatpush1.msra.mxu0 0.0
          %1501 = vmatprep.subr.mxu0 0.0
          %1502 = vmatpush1.msra.mxu0 0.0
          %1503 = vmatprep.subr.mxu0 0.0
          %1504 = vmatpush1.msra.mxu0 0.0
          %1505 = vmatprep.subr.mxu0 0.0
          %1506 = vmatpush1.msra.mxu0 0.0
          %1507 = vmatprep.subr.mxu0 0.0
          %1508 = vmatpush1.msra.mxu0 0.0
          %1509 = vmatprep.subr.mxu0 0.0
          %1510 = vmatpush1.msra.mxu0 0.0
          %1511 = vmatprep.subr.mxu0 0.0
          %1512 = vmatpush1.msra.mxu0 0.0
          %1513 = vmatprep.subr.mxu0 0.0
          %1514 = vmatpush1.msra.mxu0 0.0
          %1515 = vmatprep.subr.mxu0 0.0
          %1516 = vmatpush1.msra.mxu0 0.0
          %1517 = vmatprep.subr.mxu0 0.0
          %1518 = vmatpush1.msra.mxu0 0.0
          %1519 = vmatprep.subr.mxu0 0.0
          %1520 = vmatpush1.msra.mxu0 0.0
          %1521 = vmatprep.subr.mxu0 0.0
          %1522 = vmatpush1.msra.mxu0 0.0
          %1523 = vmatprep.subr.mxu0 0.0
          %1524 = vmatpush1.msra.mxu0 0.0
          %1525 = vmatprep.subr.mxu0 0.0
          %1526 = vmatpush1.msra.mxu0 0.0
          %1527 = vmatprep.subr.mxu0 0.0
          %1528 = vmatpush1.msra.mxu0 0.0
          %1529 = vmatprep.subr.mxu0 0.0
          %1530 = vmatpush1.msra.mxu0 0.0
          %1531 = vmatprep.subr.mxu0 0.0
          %1532 = vmatpush1.msra.mxu0 0.0
          %1533 = vmatprep.subr.mxu0 0.0
          %1534 = vmatpush1.msra.mxu0 0.0
          %1535 = vmatprep.subr.mxu0 0.0
          %1536 = vmatpush1.msra.mxu0 0.0
          %1537 = vmatprep.subr.mxu0 0.0
          %1538 = vmatpush1.msra.mxu0 0.0
          %1539 = vmatprep.subr.mxu0 0.0
          %1540 = vmatpush1.msra.mxu0 0.0
          %1541 = vmatprep.mubr.f32.mxu0 0.0
          %v1542 = vand.u32 %v1462, 4294901760
          %v1543 = vsub.f32 %v1462, %v1542
          %v1544 = vand.u32 %v1543, 4294901760
          %v1545 = vsub.f32 %v1543, %v1544
          %v1546 = vand.u32 %v1545, 4294901760
          %1547 = vmatmul.mubr.f32.gmra.mrb[0].mxu0 %v1546
          %v1548 = vpop.f32.mrb[0].mxu0
          %v1549 = vadd.f32 0.0, %v1548
          %v1550 = vpop.f32.mrb[0].mxu0
          %v1551 = vadd.f32 0.0, %v1550
          %1552 = vmatprep.mubr.f32.mxu0 0.0
          %v1553 = vand.u32 %v1465, 4294901760
          %v1554 = vsub.f32 %v1465, %v1553
          %v1555 = vand.u32 %v1554, 4294901760
          %v1556 = vsub.f32 %v1554, %v1555
          %v1557 = vand.u32 %v1556, 4294901760
          %1558 = vmatmul.mubr.f32.gmra.mrb[0].mxu0 %v1557
          %v1559 = vpop.f32.mrb[0].mxu0
          %v1560 = vadd.f32 0.0, %v1559
          %v1561 = vpop.f32.mrb[0].mxu0
          %v1562 = vadd.f32 0.0, %v1561
          %1563 = vmatprep.mubr.f32.mxu0 0.0
          %v1564 = vand.u32 %v1468, 4294901760
          %v1565 = vsub.f32 %v1468, %v1564
          %v1566 = vand.u32 %v1565, 4294901760
          %v1567 = vsub.f32 %v1565, %v1566
          %v1568 = vand.u32 %v1567, 4294901760
          %1569 = vmatmul.mubr.f32.gmra.mrb[0].mxu0 %v1568
          %v1570 = vpop.f32.mrb[0].mxu0
          %v1571 = vadd.f32 0.0, %v1570
          %v1572 = vpop.f32.mrb[0].mxu0
          %v1573 = vadd.f32 0.0, %v1572
          %1574 = vmatprep.mubr.f32.mxu0 0.0
          %v1575 = vand.u32 %v1471, 4294901760
          %v1576 = vsub.f32 %v1471, %v1575
          %v1577 = vand.u32 %v1576, 4294901760
          %v1578 = vsub.f32 %v1576, %v1577
          %v1579 = vand.u32 %v1578, 4294901760
          %1580 = vmatmul.mubr.f32.gmra.mrb[0].mxu0 %v1579
          %v1581 = vpop.f32.mrb[0].mxu0
          %v1582 = vadd.f32 0.0, %v1581
          %v1583 = vpop.f32.mrb[0].mxu0
          %v1584 = vadd.f32 0.0, %v1583
          %1585 = vdwg.mxu0
          %v1586 = vand.u32 %v324, 4294901760
          %v1587 = vsub.f32 %v324, %v1586
          %v1588 = vand.u32 %v1587, 4294901760
          %v1589 = vsub.f32 %v1587, %v1588
          %v1590 = vand.u32 %v1589, 4294901760
          %1591 = vmatprep.subr.mxu0 %v1590
          %v1592 = vand.u32 %v323, 4294901760
          %v1593 = vsub.f32 %v323, %v1592
          %v1594 = vand.u32 %v1593, 4294901760
          %v1595 = vsub.f32 %v1593, %v1594
          %v1596 = vand.u32 %v1595, 4294901760
          %1597 = vmatpush1.msra.mxu0 %v1596
          %v1598 = vand.u32 %v326, 4294901760
          %v1599 = vsub.f32 %v326, %v1598
          %v1600 = vand.u32 %v1599, 4294901760
          %v1601 = vsub.f32 %v1599, %v1600
          %v1602 = vand.u32 %v1601, 4294901760
          %1603 = vmatprep.subr.mxu0 %v1602
          %v1604 = vand.u32 %v325, 4294901760
          %v1605 = vsub.f32 %v325, %v1604
          %v1606 = vand.u32 %v1605, 4294901760
          %v1607 = vsub.f32 %v1605, %v1606
          %v1608 = vand.u32 %v1607, 4294901760
          %1609 = vmatpush1.msra.mxu0 %v1608
          %1610 = vmatprep.subr.mxu0 0.0
          %1611 = vmatpush1.msra.mxu0 0.0
          %1612 = vmatprep.subr.mxu0 0.0
          %1613 = vmatpush1.msra.mxu0 0.0
          %1614 = vmatprep.subr.mxu0 0.0
          %1615 = vmatpush1.msra.mxu0 0.0
          %1616 = vmatprep.subr.mxu0 0.0
          %1617 = vmatpush1.msra.mxu0 0.0
          %1618 = vmatprep.subr.mxu0 0.0
          %1619 = vmatpush1.msra.mxu0 0.0
          %1620 = vmatprep.subr.mxu0 0.0
          %1621 = vmatpush1.msra.mxu0 0.0
          %1622 = vmatprep.subr.mxu0 0.0
          %1623 = vmatpush1.msra.mxu0 0.0
          %1624 = vmatprep.subr.mxu0 0.0
          %1625 = vmatpush1.msra.mxu0 0.0
          %1626 = vmatprep.subr.mxu0 0.0
          %1627 = vmatpush1.msra.mxu0 0.0
          %1628 = vmatprep.subr.mxu0 0.0
          %1629 = vmatpush1.msra.mxu0 0.0
          %1630 = vmatprep.subr.mxu0 0.0
          %1631 = vmatpush1.msra.mxu0 0.0
          %1632 = vmatprep.subr.mxu0 0.0
          %1633 = vmatpush1.msra.mxu0 0.0
          %1634 = vmatprep.subr.mxu0 0.0
          %1635 = vmatpush1.msra.mxu0 0.0
          %1636 = vmatprep.subr.mxu0 0.0
          %1637 = vmatpush1.msra.mxu0 0.0
          %1638 = vmatprep.subr.mxu0 0.0
          %1639 = vmatpush1.msra.mxu0 0.0
          %1640 = vmatprep.subr.mxu0 0.0
          %1641 = vmatpush1.msra.mxu0 0.0
          %1642 = vmatprep.subr.mxu0 0.0
          %1643 = vmatpush1.msra.mxu0 0.0
          %1644 = vmatprep.subr.mxu0 0.0
          %1645 = vmatpush1.msra.mxu0 0.0
          %1646 = vmatprep.subr.mxu0 0.0
          %1647 = vmatpush1.msra.mxu0 0.0
          %1648 = vmatprep.subr.mxu0 0.0
          %1649 = vmatpush1.msra.mxu0 0.0
          %1650 = vmatprep.subr.mxu0 0.0
          %1651 = vmatpush1.msra.mxu0 0.0
          %1652 = vmatprep.subr.mxu0 0.0
          %1653 = vmatpush1.msra.mxu0 0.0
          %1654 = vmatprep.subr.mxu0 0.0
          %1655 = vmatpush1.msra.mxu0 0.0
          %1656 = vmatprep.subr.mxu0 0.0
          %1657 = vmatpush1.msra.mxu0 0.0
          %1658 = vmatprep.subr.mxu0 0.0
          %1659 = vmatpush1.msra.mxu0 0.0
          %1660 = vmatprep.subr.mxu0 0.0
          %1661 = vmatpush1.msra.mxu0 0.0
          %1662 = vmatprep.subr.mxu0 0.0
          %1663 = vmatpush1.msra.mxu0 0.0
          %1664 = vmatprep.subr.mxu0 0.0
          %1665 = vmatpush1.msra.mxu0 0.0
          %1666 = vmatprep.subr.mxu0 0.0
          %1667 = vmatpush1.msra.mxu0 0.0
          %1668 = vmatprep.subr.mxu0 0.0
          %1669 = vmatpush1.msra.mxu0 0.0
          %1670 = vmatprep.mubr.f32.mxu0 0.0
          %v1671 = vand.u32 %v1462, 4294901760
          %1672 = vmatmul.mubr.f32.gmra.mrb[0].mxu0 %v1671
          %v1673 = vpop.f32.mrb[0].mxu0
          %v1674 = vadd.f32 %v1549, %v1673
          %v1675 = vpop.f32.mrb[0].mxu0
          %v1676 = vadd.f32 %v1551, %v1675
          %1677 = vmatprep.mubr.f32.mxu0 0.0
          %v1678 = vand.u32 %v1465, 4294901760
          %1679 = vmatmul.mubr.f32.gmra.mrb[0].mxu0 %v1678
          %v1680 = vpop.f32.mrb[0].mxu0
          %v1681 = vadd.f32 %v1560, %v1680
          %v1682 = vpop.f32.mrb[0].mxu0
          %v1683 = vadd.f32 %v1562, %v1682
          %1684 = vmatprep.mubr.f32.mxu0 0.0
          %v1685 = vand.u32 %v1468, 4294901760
          %1686 = vmatmul.mubr.f32.gmra.mrb[0].mxu0 %v1685
          %v1687 = vpop.f32.mrb[0].mxu0
          %v1688 = vadd.f32 %v1571, %v1687
          %v1689 = vpop.f32.mrb[0].mxu0
          %v1690 = vadd.f32 %v1573, %v1689
          %1691 = vmatprep.mubr.f32.mxu0 0.0
          %v1692 = vand.u32 %v1471, 4294901760
          %1693 = vmatmul.mubr.f32.gmra.mrb[0].mxu0 %v1692
          %v1694 = vpop.f32.mrb[0].mxu0
          %v1695 = vadd.f32 %v1582, %v1694
          %v1696 = vpop.f32.mrb[0].mxu0
          %v1697 = vadd.f32 %v1584, %v1696
          %1698 = vdwg.mxu0
          %v1699 = vand.u32 %v324, 4294901760
          %v1700 = vsub.f32 %v324, %v1699
          %1701 = vmatprep.subr.mxu0 %v1700
          %v1702 = vand.u32 %v323, 4294901760
          %v1703 = vsub.f32 %v323, %v1702
          %1704 = vmatpush1.msra.mxu0 %v1703
          %v1705 = vand.u32 %v326, 4294901760
          %v1706 = vsub.f32 %v326, %v1705
          %1707 = vmatprep.subr.mxu0 %v1706
          %v1708 = vand.u32 %v325, 4294901760
          %v1709 = vsub.f32 %v325, %v1708
          %1710 = vmatpush1.msra.mxu0 %v1709
          %1711 = vmatprep.subr.mxu0 0.0
          %1712 = vmatpush1.msra.mxu0 0.0
          %1713 = vmatprep.subr.mxu0 0.0
          %1714 = vmatpush1.msra.mxu0 0.0
          %1715 = vmatprep.subr.mxu0 0.0
          %1716 = vmatpush1.msra.mxu0 0.0
          %1717 = vmatprep.subr.mxu0 0.0
          %1718 = vmatpush1.msra.mxu0 0.0
          %1719 = vmatprep.subr.mxu0 0.0
          %1720 = vmatpush1.msra.mxu0 0.0
          %1721 = vmatprep.subr.mxu0 0.0
          %1722 = vmatpush1.msra.mxu0 0.0
          %1723 = vmatprep.subr.mxu0 0.0
          %1724 = vmatpush1.msra.mxu0 0.0
          %1725 = vmatprep.subr.mxu0 0.0
          %1726 = vmatpush1.msra.mxu0 0.0
          %1727 = vmatprep.subr.mxu0 0.0
          %1728 = vmatpush1.msra.mxu0 0.0
          %1729 = vmatprep.subr.mxu0 0.0
          %1730 = vmatpush1.msra.mxu0 0.0
          %1731 = vmatprep.subr.mxu0 0.0
          %1732 = vmatpush1.msra.mxu0 0.0
          %1733 = vmatprep.subr.mxu0 0.0
          %1734 = vmatpush1.msra.mxu0 0.0
          %1735 = vmatprep.subr.mxu0 0.0
          %1736 = vmatpush1.msra.mxu0 0.0
          %1737 = vmatprep.subr.mxu0 0.0
          %1738 = vmatpush1.msra.mxu0 0.0
          %1739 = vmatprep.subr.mxu0 0.0
          %1740 = vmatpush1.msra.mxu0 0.0
          %1741 = vmatprep.subr.mxu0 0.0
          %1742 = vmatpush1.msra.mxu0 0.0
          %1743 = vmatprep.subr.mxu0 0.0
          %1744 = vmatpush1.msra.mxu0 0.0
          %1745 = vmatprep.subr.mxu0 0.0
          %1746 = vmatpush1.msra.mxu0 0.0
          %1747 = vmatprep.subr.mxu0 0.0
          %1748 = vmatpush1.msra.mxu0 0.0
          %1749 = vmatprep.subr.mxu0 0.0
          %1750 = vmatpush1.msra.mxu0 0.0
          %1751 = vmatprep.subr.mxu0 0.0
          %1752 = vmatpush1.msra.mxu0 0.0
          %1753 = vmatprep.subr.mxu0 0.0
          %1754 = vmatpush1.msra.mxu0 0.0
          %1755 = vmatprep.subr.mxu0 0.0
          %1756 = vmatpush1.msra.mxu0 0.0
          %1757 = vmatprep.subr.mxu0 0.0
          %1758 = vmatpush1.msra.mxu0 0.0
          %1759 = vmatprep.subr.mxu0 0.0
          %1760 = vmatpush1.msra.mxu0 0.0
          %1761 = vmatprep.subr.mxu0 0.0
          %1762 = vmatpush1.msra.mxu0 0.0
          %1763 = vmatprep.subr.mxu0 0.0
          %1764 = vmatpush1.msra.mxu0 0.0
          %1765 = vmatprep.subr.mxu0 0.0
          %1766 = vmatpush1.msra.mxu0 0.0
          %1767 = vmatprep.subr.mxu0 0.0
          %1768 = vmatpush1.msra.mxu0 0.0
          %1769 = vmatprep.subr.mxu0 0.0
          %1770 = vmatpush1.msra.mxu0 0.0
          %1771 = vmatprep.mubr.f32.mxu0 0.0
          %v1772 = vand.u32 %v1462, 4294901760
          %v1773 = vsub.f32 %v1462, %v1772
          %1774 = vmatmul.mubr.f32.gmra.mrb[0].mxu0 %v1773
          %v1775 = vpop.f32.mrb[0].mxu0
          %v1776 = vadd.f32 %v1674, %v1775
          %v1777 = vpop.f32.mrb[0].mxu0
          %v1778 = vadd.f32 %v1676, %v1777
          %1779 = vmatprep.mubr.f32.mxu0 0.0
          %v1780 = vand.u32 %v1465, 4294901760
          %v1781 = vsub.f32 %v1465, %v1780
          %1782 = vmatmul.mubr.f32.gmra.mrb[0].mxu0 %v1781
          %v1783 = vpop.f32.mrb[0].mxu0
          %v1784 = vadd.f32 %v1681, %v1783
          %v1785 = vpop.f32.mrb[0].mxu0
          %v1786 = vadd.f32 %v1683, %v1785
          %1787 = vmatprep.mubr.f32.mxu0 0.0
          %v1788 = vand.u32 %v1468, 4294901760
          %v1789 = vsub.f32 %v1468, %v1788
          %1790 = vmatmul.mubr.f32.gmra.mrb[0].mxu0 %v1789
          %v1791 = vpop.f32.mrb[0].mxu0
          %v1792 = vadd.f32 %v1688, %v1791
          %v1793 = vpop.f32.mrb[0].mxu0
          %v1794 = vadd.f32 %v1690, %v1793
          %1795 = vmatprep.mubr.f32.mxu0 0.0
          %v1796 = vand.u32 %v1471, 4294901760
          %v1797 = vsub.f32 %v1471, %v1796
          %1798 = vmatmul.mubr.f32.gmra.mrb[0].mxu0 %v1797
          %v1799 = vpop.f32.mrb[0].mxu0
          %v1800 = vadd.f32 %v1695, %v1799
          %v1801 = vpop.f32.mrb[0].mxu0
          %v1802 = vadd.f32 %v1697, %v1801
          %1803 = vdwg.mxu0
          %v1804 = vand.u32 %v324, 4294901760
          %1805 = vmatprep.subr.mxu0 %v1804
          %v1806 = vand.u32 %v323, 4294901760
          %1807 = vmatpush1.msra.mxu0 %v1806
          %v1808 = vand.u32 %v326, 4294901760
          %1809 = vmatprep.subr.mxu0 %v1808
          %v1810 = vand.u32 %v325, 4294901760
          %1811 = vmatpush1.msra.mxu0 %v1810
          %1812 = vmatprep.subr.mxu0 0.0
          %1813 = vmatpush1.msra.mxu0 0.0
          %1814 = vmatprep.subr.mxu0 0.0
          %1815 = vmatpush1.msra.mxu0 0.0
          %1816 = vmatprep.subr.mxu0 0.0
          %1817 = vmatpush1.msra.mxu0 0.0
          %1818 = vmatprep.subr.mxu0 0.0
          %1819 = vmatpush1.msra.mxu0 0.0
          %1820 = vmatprep.subr.mxu0 0.0
          %1821 = vmatpush1.msra.mxu0 0.0
          %1822 = vmatprep.subr.mxu0 0.0
          %1823 = vmatpush1.msra.mxu0 0.0
          %1824 = vmatprep.subr.mxu0 0.0
          %1825 = vmatpush1.msra.mxu0 0.0
          %1826 = vmatprep.subr.mxu0 0.0
          %1827 = vmatpush1.msra.mxu0 0.0
          %1828 = vmatprep.subr.mxu0 0.0
          %1829 = vmatpush1.msra.mxu0 0.0
          %1830 = vmatprep.subr.mxu0 0.0
          %1831 = vmatpush1.msra.mxu0 0.0
          %1832 = vmatprep.subr.mxu0 0.0
          %1833 = vmatpush1.msra.mxu0 0.0
          %1834 = vmatprep.subr.mxu0 0.0
          %1835 = vmatpush1.msra.mxu0 0.0
          %1836 = vmatprep.subr.mxu0 0.0
          %1837 = vmatpush1.msra.mxu0 0.0
          %1838 = vmatprep.subr.mxu0 0.0
          %1839 = vmatpush1.msra.mxu0 0.0
          %1840 = vmatprep.subr.mxu0 0.0
          %1841 = vmatpush1.msra.mxu0 0.0
          %1842 = vmatprep.subr.mxu0 0.0
          %1843 = vmatpush1.msra.mxu0 0.0
          %1844 = vmatprep.subr.mxu0 0.0
          %1845 = vmatpush1.msra.mxu0 0.0
          %1846 = vmatprep.subr.mxu0 0.0
          %1847 = vmatpush1.msra.mxu0 0.0
          %1848 = vmatprep.subr.mxu0 0.0
          %1849 = vmatpush1.msra.mxu0 0.0
          %1850 = vmatprep.subr.mxu0 0.0
          %1851 = vmatpush1.msra.mxu0 0.0
          %1852 = vmatprep.subr.mxu0 0.0
          %1853 = vmatpush1.msra.mxu0 0.0
          %1854 = vmatprep.subr.mxu0 0.0
          %1855 = vmatpush1.msra.mxu0 0.0
          %1856 = vmatprep.subr.mxu0 0.0
          %1857 = vmatpush1.msra.mxu0 0.0
          %1858 = vmatprep.subr.mxu0 0.0
          %1859 = vmatpush1.msra.mxu0 0.0
          %1860 = vmatprep.subr.mxu0 0.0
          %1861 = vmatpush1.msra.mxu0 0.0
          %1862 = vmatprep.subr.mxu0 0.0
          %1863 = vmatpush1.msra.mxu0 0.0
          %1864 = vmatprep.subr.mxu0 0.0
          %1865 = vmatpush1.msra.mxu0 0.0
          %1866 = vmatprep.subr.mxu0 0.0
          %1867 = vmatpush1.msra.mxu0 0.0
          %1868 = vmatprep.subr.mxu0 0.0
          %1869 = vmatpush1.msra.mxu0 0.0
          %1870 = vmatprep.subr.mxu0 0.0
          %1871 = vmatpush1.msra.mxu0 0.0
          %1872 = vmatprep.mubr.f32.mxu0 0.0
          %v1873 = vand.u32 %v1462, 4294901760
          %v1874 = vsub.f32 %v1462, %v1873
          %v1875 = vand.u32 %v1874, 4294901760
          %1876 = vmatmul.mubr.f32.gmra.mrb[0].mxu0 %v1875
          %v1877 = vpop.f32.mrb[0].mxu0
          %v1878 = vadd.f32 %v1776, %v1877
          %v1879 = vpop.f32.mrb[0].mxu0
          %v1880 = vadd.f32 %v1778, %v1879
          %1881 = vmatprep.mubr.f32.mxu0 0.0
          %v1882 = vand.u32 %v1465, 4294901760
          %v1883 = vsub.f32 %v1465, %v1882
          %v1884 = vand.u32 %v1883, 4294901760
          %1885 = vmatmul.mubr.f32.gmra.mrb[0].mxu0 %v1884
          %v1886 = vpop.f32.mrb[0].mxu0
          %v1887 = vadd.f32 %v1784, %v1886
          %v1888 = vpop.f32.mrb[0].mxu0
          %v1889 = vadd.f32 %v1786, %v1888
          %1890 = vmatprep.mubr.f32.mxu0 0.0
          %v1891 = vand.u32 %v1468, 4294901760
          %v1892 = vsub.f32 %v1468, %v1891
          %v1893 = vand.u32 %v1892, 4294901760
          %1894 = vmatmul.mubr.f32.gmra.mrb[0].mxu0 %v1893
          %v1895 = vpop.f32.mrb[0].mxu0
          %v1896 = vadd.f32 %v1792, %v1895
          %v1897 = vpop.f32.mrb[0].mxu0
          %v1898 = vadd.f32 %v1794, %v1897
          %1899 = vmatprep.mubr.f32.mxu0 0.0
          %v1900 = vand.u32 %v1471, 4294901760
          %v1901 = vsub.f32 %v1471, %v1900
          %v1902 = vand.u32 %v1901, 4294901760
          %1903 = vmatmul.mubr.f32.gmra.mrb[0].mxu0 %v1902
          %v1904 = vpop.f32.mrb[0].mxu0
          %v1905 = vadd.f32 %v1800, %v1904
          %v1906 = vpop.f32.mrb[0].mxu0
          %v1907 = vadd.f32 %v1802, %v1906
          %1908 = vdwg.mxu0
          %v1909 = vand.u32 %v324, 4294901760
          %v1910 = vsub.f32 %v324, %v1909
          %v1911 = vand.u32 %v1910, 4294901760
          %1912 = vmatprep.subr.mxu0 %v1911
          %v1913 = vand.u32 %v323, 4294901760
          %v1914 = vsub.f32 %v323, %v1913
          %v1915 = vand.u32 %v1914, 4294901760
          %1916 = vmatpush1.msra.mxu0 %v1915
          %v1917 = vand.u32 %v326, 4294901760
          %v1918 = vsub.f32 %v326, %v1917
          %v1919 = vand.u32 %v1918, 4294901760
          %1920 = vmatprep.subr.mxu0 %v1919
          %v1921 = vand.u32 %v325, 4294901760
          %v1922 = vsub.f32 %v325, %v1921
          %v1923 = vand.u32 %v1922, 4294901760
          %1924 = vmatpush1.msra.mxu0 %v1923
          %1925 = vmatprep.subr.mxu0 0.0
          %1926 = vmatpush1.msra.mxu0 0.0
          %1927 = vmatprep.subr.mxu0 0.0
          %1928 = vmatpush1.msra.mxu0 0.0
          %1929 = vmatprep.subr.mxu0 0.0
          %1930 = vmatpush1.msra.mxu0 0.0
          %1931 = vmatprep.subr.mxu0 0.0
          %1932 = vmatpush1.msra.mxu0 0.0
          %1933 = vmatprep.subr.mxu0 0.0
          %1934 = vmatpush1.msra.mxu0 0.0
          %1935 = vmatprep.subr.mxu0 0.0
          %1936 = vmatpush1.msra.mxu0 0.0
          %1937 = vmatprep.subr.mxu0 0.0
          %1938 = vmatpush1.msra.mxu0 0.0
          %1939 = vmatprep.subr.mxu0 0.0
          %1940 = vmatpush1.msra.mxu0 0.0
          %1941 = vmatprep.subr.mxu0 0.0
          %1942 = vmatpush1.msra.mxu0 0.0
          %1943 = vmatprep.subr.mxu0 0.0
          %1944 = vmatpush1.msra.mxu0 0.0
          %1945 = vmatprep.subr.mxu0 0.0
          %1946 = vmatpush1.msra.mxu0 0.0
          %1947 = vmatprep.subr.mxu0 0.0
          %1948 = vmatpush1.msra.mxu0 0.0
          %1949 = vmatprep.subr.mxu0 0.0
          %1950 = vmatpush1.msra.mxu0 0.0
          %1951 = vmatprep.subr.mxu0 0.0
          %1952 = vmatpush1.msra.mxu0 0.0
          %1953 = vmatprep.subr.mxu0 0.0
          %1954 = vmatpush1.msra.mxu0 0.0
          %1955 = vmatprep.subr.mxu0 0.0
          %1956 = vmatpush1.msra.mxu0 0.0
          %1957 = vmatprep.subr.mxu0 0.0
          %1958 = vmatpush1.msra.mxu0 0.0
          %1959 = vmatprep.subr.mxu0 0.0
          %1960 = vmatpush1.msra.mxu0 0.0
          %1961 = vmatprep.subr.mxu0 0.0
          %1962 = vmatpush1.msra.mxu0 0.0
          %1963 = vmatprep.subr.mxu0 0.0
          %1964 = vmatpush1.msra.mxu0 0.0
          %1965 = vmatprep.subr.mxu0 0.0
          %1966 = vmatpush1.msra.mxu0 0.0
          %1967 = vmatprep.subr.mxu0 0.0
          %1968 = vmatpush1.msra.mxu0 0.0
          %1969 = vmatprep.subr.mxu0 0.0
          %1970 = vmatpush1.msra.mxu0 0.0
          %1971 = vmatprep.subr.mxu0 0.0
          %1972 = vmatpush1.msra.mxu0 0.0
          %1973 = vmatprep.subr.mxu0 0.0
          %1974 = vmatpush1.msra.mxu0 0.0
          %1975 = vmatprep.subr.mxu0 0.0
          %1976 = vmatpush1.msra.mxu0 0.0
          %1977 = vmatprep.subr.mxu0 0.0
          %1978 = vmatpush1.msra.mxu0 0.0
          %1979 = vmatprep.subr.mxu0 0.0
          %1980 = vmatpush1.msra.mxu0 0.0
          %1981 = vmatprep.subr.mxu0 0.0
          %1982 = vmatpush1.msra.mxu0 0.0
          %1983 = vmatprep.subr.mxu0 0.0
          %1984 = vmatpush1.msra.mxu0 0.0
          %1985 = vmatprep.mubr.f32.mxu0 0.0
          %v1986 = vand.u32 %v1462, 4294901760
          %1987 = vmatmul.mubr.f32.gmra.mrb[0].mxu0 %v1986
          %v1988 = vpop.f32.mrb[0].mxu0
          %v1989 = vadd.f32 %v1878, %v1988
          %v1990 = vpop.f32.mrb[0].mxu0
          %v1991 = vadd.f32 %v1880, %v1990
          %1992 = vmatprep.mubr.f32.mxu0 0.0
          %v1993 = vand.u32 %v1465, 4294901760
          %1994 = vmatmul.mubr.f32.gmra.mrb[0].mxu0 %v1993
          %v1995 = vpop.f32.mrb[0].mxu0
          %v1996 = vadd.f32 %v1887, %v1995
          %v1997 = vpop.f32.mrb[0].mxu0
          %v1998 = vadd.f32 %v1889, %v1997
          %1999 = vmatprep.mubr.f32.mxu0 0.0
          %v2000 = vand.u32 %v1468, 4294901760
          %2001 = vmatmul.mubr.f32.gmra.mrb[0].mxu0 %v2000
          %v2002 = vpop.f32.mrb[0].mxu0
          %v2003 = vadd.f32 %v1896, %v2002
          %v2004 = vpop.f32.mrb[0].mxu0
          %v2005 = vadd.f32 %v1898, %v2004
          %2006 = vmatprep.mubr.f32.mxu0 0.0
          %v2007 = vand.u32 %v1471, 4294901760
          %2008 = vmatmul.mubr.f32.gmra.mrb[0].mxu0 %v2007
          %v2009 = vpop.f32.mrb[0].mxu0
          %v2010 = vadd.f32 %v1905, %v2009
          %v2011 = vpop.f32.mrb[0].mxu0
          %v2012 = vadd.f32 %v1907, %v2011
          %2013 = vdwg.mxu0
          %v2014 = vand.u32 %v324, 4294901760
          %2015 = vmatprep.subr.mxu0 %v2014
          %v2016 = vand.u32 %v323, 4294901760
          %2017 = vmatpush1.msra.mxu0 %v2016
          %v2018 = vand.u32 %v326, 4294901760
          %2019 = vmatprep.subr.mxu0 %v2018
          %v2020 = vand.u32 %v325, 4294901760
          %2021 = vmatpush1.msra.mxu0 %v2020
          %2022 = vmatprep.subr.mxu0 0.0
          %2023 = vmatpush1.msra.mxu0 0.0
          %2024 = vmatprep.subr.mxu0 0.0
          %2025 = vmatpush1.msra.mxu0 0.0
          %2026 = vmatprep.subr.mxu0 0.0
          %2027 = vmatpush1.msra.mxu0 0.0
          %2028 = vmatprep.subr.mxu0 0.0
          %2029 = vmatpush1.msra.mxu0 0.0
          %2030 = vmatprep.subr.mxu0 0.0
          %2031 = vmatpush1.msra.mxu0 0.0
          %2032 = vmatprep.subr.mxu0 0.0
          %2033 = vmatpush1.msra.mxu0 0.0
          %2034 = vmatprep.subr.mxu0 0.0
          %2035 = vmatpush1.msra.mxu0 0.0
          %2036 = vmatprep.subr.mxu0 0.0
          %2037 = vmatpush1.msra.mxu0 0.0
          %2038 = vmatprep.subr.mxu0 0.0
          %2039 = vmatpush1.msra.mxu0 0.0
          %2040 = vmatprep.subr.mxu0 0.0
          %2041 = vmatpush1.msra.mxu0 0.0
          %2042 = vmatprep.subr.mxu0 0.0
          %2043 = vmatpush1.msra.mxu0 0.0
          %2044 = vmatprep.subr.mxu0 0.0
          %2045 = vmatpush1.msra.mxu0 0.0
          %2046 = vmatprep.subr.mxu0 0.0
          %2047 = vmatpush1.msra.mxu0 0.0
          %2048 = vmatprep.subr.mxu0 0.0
          %2049 = vmatpush1.msra.mxu0 0.0
          %2050 = vmatprep.subr.mxu0 0.0
          %2051 = vmatpush1.msra.mxu0 0.0
          %2052 = vmatprep.subr.mxu0 0.0
          %2053 = vmatpush1.msra.mxu0 0.0
          %2054 = vmatprep.subr.mxu0 0.0
          %2055 = vmatpush1.msra.mxu0 0.0
          %2056 = vmatprep.subr.mxu0 0.0
          %2057 = vmatpush1.msra.mxu0 0.0
          %2058 = vmatprep.subr.mxu0 0.0
          %2059 = vmatpush1.msra.mxu0 0.0
          %2060 = vmatprep.subr.mxu0 0.0
          %2061 = vmatpush1.msra.mxu0 0.0
          %2062 = vmatprep.subr.mxu0 0.0
          %2063 = vmatpush1.msra.mxu0 0.0
          %2064 = vmatprep.subr.mxu0 0.0
          %2065 = vmatpush1.msra.mxu0 0.0
          %2066 = vmatprep.subr.mxu0 0.0
          %2067 = vmatpush1.msra.mxu0 0.0
          %2068 = vmatprep.subr.mxu0 0.0
          %2069 = vmatpush1.msra.mxu0 0.0
          %2070 = vmatprep.subr.mxu0 0.0
          %2071 = vmatpush1.msra.mxu0 0.0
          %2072 = vmatprep.subr.mxu0 0.0
          %2073 = vmatpush1.msra.mxu0 0.0
          %2074 = vmatprep.subr.mxu0 0.0
          %2075 = vmatpush1.msra.mxu0 0.0
          %2076 = vmatprep.subr.mxu0 0.0
          %2077 = vmatpush1.msra.mxu0 0.0
          %2078 = vmatprep.subr.mxu0 0.0
          %2079 = vmatpush1.msra.mxu0 0.0
          %2080 = vmatprep.subr.mxu0 0.0
          %2081 = vmatpush1.msra.mxu0 0.0
          %2082 = vmatprep.mubr.f32.mxu0 0.0
          %v2083 = vand.u32 %v1462, 4294901760
          %2084 = vmatmul.mubr.f32.gmra.mrb[0].mxu0 %v2083
          %v2085 = vpop.f32.mrb[0].mxu0
          %v2086 = vadd.f32 %v1989, %v2085
          %v2087 = vpop.f32.mrb[0].mxu0
          %v2088 = vadd.f32 %v1991, %v2087
          %2089 = vmatprep.mubr.f32.mxu0 0.0
          %v2090 = vand.u32 %v1465, 4294901760
          %2091 = vmatmul.mubr.f32.gmra.mrb[0].mxu0 %v2090
          %v2092 = vpop.f32.mrb[0].mxu0
          %v2093 = vadd.f32 %v1996, %v2092
          %v2094 = vpop.f32.mrb[0].mxu0
          %v2095 = vadd.f32 %v1998, %v2094
          %2096 = vmatprep.mubr.f32.mxu0 0.0
          %v2097 = vand.u32 %v1468, 4294901760
          %2098 = vmatmul.mubr.f32.gmra.mrb[0].mxu0 %v2097
          %v2099 = vpop.f32.mrb[0].mxu0
          %v2100 = vadd.f32 %v2003, %v2099
          %v2101 = vpop.f32.mrb[0].mxu0
          %v2102 = vadd.f32 %v2005, %v2101
          %2103 = vmatprep.mubr.f32.mxu0 0.0
          %v2104 = vand.u32 %v1471, 4294901760
          %2105 = vmatmul.mubr.f32.gmra.mrb[0].mxu0 %v2104
          %v2106 = vpop.f32.mrb[0].mxu0
          %v2107 = vadd.f32 %v2010, %v2106
          %v2108 = vpop.f32.mrb[0].mxu0
          %v2109 = vadd.f32 %v2012, %v2108
          %2110 = vdwg.mxu0
          %v2111 = vmul.f32 %v2086, %v382
          %v2112 = vmul.f32 %v2088, %v383
          %v2113 = vmul.f32 %v2093, %v384
          %v2114 = vmul.f32 %v2095, %v385
          %v2115 = vadd.f32 %v2111, %v2113
          %v2116 = vrot.slane %v2115, 4
          %v2117 = vadd.f32 %v2115, %v2116
          %v2118 = vrot.slane %v2117, 2
          %v2119 = vadd.f32 %v2117, %v2118
          %v2120 = vrot.slane %v2119, 1
          %v2121 = vadd.f32 %v2119, %v2120
          %v2122 = vadd.f32 %v2112, %v2114
          %v2123 = vrot.slane %v2122, 4
          %v2124 = vadd.f32 %v2122, %v2123
          %v2125 = vrot.slane %v2124, 2
          %v2126 = vadd.f32 %v2124, %v2125
          %v2127 = vrot.slane %v2126, 1
          %v2128 = vadd.f32 %v2126, %v2127
          %v2129 = vmul.f32 %v2100, %v382
          %v2130 = vmul.f32 %v2102, %v383
          %v2131 = vmul.f32 %v2107, %v384
          %v2132 = vmul.f32 %v2109, %v385
          %v2133 = vadd.f32 %v2129, %v2131
          %v2134 = vrot.slane %v2133, 4
          %v2135 = vadd.f32 %v2133, %v2134
          %v2136 = vrot.slane %v2135, 2
          %v2137 = vadd.f32 %v2135, %v2136
          %v2138 = vrot.slane %v2137, 1
          %v2139 = vadd.f32 %v2137, %v2138
          %v2140 = vadd.f32 %v2130, %v2132
          %v2141 = vrot.slane %v2140, 4
          %v2142 = vadd.f32 %v2140, %v2141
          %v2143 = vrot.slane %v2142, 2
          %v2144 = vadd.f32 %v2142, %v2143
          %v2145 = vrot.slane %v2144, 1
          %v2146 = vadd.f32 %v2144, %v2145
          %vm2147 = vcmask 1040384
          %v2148 = vsel %vm2147, %v2121, %v2139
          %v2149 = vsel %vm2147, %v2128, %v2146
          %v2152 = vcombine.low %v2148, %v2149
          %v2154 = vunpack.c.l.s4 1983009808
          %v2155 = vunpack.c.0.s8 %v2154
          %v2156 = vlaneseq
          %v2157 = vshrl.u32 %v2156, 7
          %v2158 = vsub.s32 %v2155, %v2157
          %v2159 = vrot.slane %v2152, %v2158
          %v2161 = vadd.f32 %v246, %v2159
        $region41: #{tpu_custom_call.1} parent=35 // loop_footer
          %s245 = sadd.s32 1, %s241
        $region42: #{tpu_custom_call.1} parent=35 // loop_footer_branch
          %240 = sbr.rel target = $region38
        $region43: #{tpu_custom_call.1} parent=35 // loop_exit
          _
        %2162 = vst [vmem:[%s190] sm:$0xf] %v246
        %s2163 = sand.u32 %s115, 1
        %s2164 = scalar_lea.sflag [#allocation3], %s2163
        %s2165 = sand.u32 %s115, 1
        %s2166 = smul.addr %s2165, 4
        %s2167 = scalar_lea.vmem [#allocation2], %s2166
        // Predicated region
        $region44: #{tpu_custom_call.1} parent=35 // pred_check
          %p2168 = pneg %p125
        $region45: #{tpu_custom_call.1} parent=35 // pred_check_branch
          %2170 = sbr.rel (%p2168) target = $region47
        $region46: #{tpu_custom_call.1} parent=35 // pred_region
          %s2172 = ssub.s32 64, 64
          %2173 = vsyncadd %s2164, %s2172
          %s2174 = smul.addr %s18, 2
          %s2175 = smul.addr %s2174, 32
          %s2176 = scalar_lea.hbm %s4, %s2175
          %s2178 = sshll.u32 %s2167, 4
          %s2179 = int_to_ptr.vmem [resolvable:$true] %s2178
          %2181 = dma.vmem_to_hbm [thread:$0]  %s2179, 64, %s2176, %s2164
        $region47: #{tpu_custom_call.1} parent=35 // pred_fallthru
          _
      $region36: #{tpu_custom_call.1} parent=5 // pred_fallthru
        _
      %p2182 = scmp.le.s32.totalorder 2, %s13
      // Predicated region
      $region48: #{tpu_custom_call.1} parent=5 // pred_check
        %p2183 = pneg %p2182
      $region49: #{tpu_custom_call.1} parent=5 // pred_check_branch
        %2185 = sbr.rel (%p2183) target = $region51
      $region50: #{tpu_custom_call.1} parent=5 // pred_region
        %s2186 = ssub.s32 %s13, 2
        // Predicated region
        $region52: #{tpu_custom_call.1} parent=50 // pred_check
          %p2187 = pneg %p131
        $region53: #{tpu_custom_call.1} parent=50 // pred_check_branch
          %2189 = sbr.rel (%p2187) target = $region55
        $region54: #{tpu_custom_call.1} parent=50 // pred_region
          %s2190 = sand.u32 %s116, 1
          %s2191 = scalar_lea.sflag [#allocation3], %s2190
          %s2192 = sand.u32 %s116, 1
          %s2193 = smul.addr %s2192, 4
          %s2194 = scalar_lea.vmem [#allocation2], %s2193
          %2195 = dma.done %s2191, 64
        $region55: #{tpu_custom_call.1} parent=50 // pred_fallthru
          _
      $region51: #{tpu_custom_call.1} parent=5 // pred_fallthru
        _
    $region6: #{tpu_custom_call.1} parent=1 // loop_footer
      %s17 = sadd.s32 1, %s13
    $region7: #{tpu_custom_call.1} parent=1 // loop_footer_branch
      %12 = sbr.rel target = $region3
    $region8: #{tpu_custom_call.1} parent=1 // loop_exit
      _
    %2196 = vsyncpa [#allocation3], 1
    %s2197 = scalar_lea.sflag [#allocation3], 1
    %2198 = vsyncpa %s2197, 1

</llo_original>
